<compile_context>
chip_gen: v5e
topology: v5e:2x2
jax: 0.10.0
libtpu: 0.0.40
codegen_flags: <defaults>
</compile_context>

<pallas_src>
import functools
import math

import numpy as np
import jax
import jax.numpy as jnp
from jax.experimental import pallas as pl
from jax.experimental.pallas import tpu as pltpu

COMPUTE_DTYPE = jnp.bfloat16          # MXU input dtype (f32 accumulation)
_LN_EPS = 1e-5
_GELU_C = 0.7071067811865476          # 1/sqrt(2)


def _get_vmem_budget():
    """Per-generation VMEM budget (v5e/v6e 128 MiB -> ~96 MiB, v7x 64 -> 48)."""
    try:
        cap = pltpu.get_tpu_info().vmem_capacity_bytes
        if cap:
            return min(int(cap) * 3 // 4, 100 * 1024 * 1024)
    except Exception:
        pass
    return 48 * 1024 * 1024            # safe on every generation (v7x = 64 MiB)


_VMEM_BUDGET = _get_vmem_budget()


def _compiler_params(dims):
    return pltpu.CompilerParams(
        dimension_semantics=dims,
        vmem_limit_bytes=_VMEM_BUDGET,
    )


def _tile(dim, preferred):
    """Pick a BlockSpec-legal tile and a padded extent.

    Returns (tile, padded_dim).  Full-axis blocks are always legal; otherwise
    the (8,128)-aligned `preferred` tile is used and the axis is padded up to
    a multiple of it (caller pads inputs / slices outputs).
    """
    if dim <= preferred:
        return dim, dim
    if dim % preferred == 0:
        return preferred, dim
    padded = -(-dim // preferred) * preferred
    return preferred, padded


def _layernorm(x, g, b):
    mu = jnp.mean(x, axis=-1, keepdims=True)
    xc = x - mu
    var = jnp.mean(xc * xc, axis=-1, keepdims=True)      # biased var (torch LN)
    return xc * jax.lax.rsqrt(var + _LN_EPS) * g + b


# --------------------------------------------------------------------------
# Kernel 1: fused LayerNorm + linear (ln1 -> qkv projection), bf16 output.
# grid = (row_tiles, col_tiles); LN computed once per row tile into a bf16
# scratch; when the weight fits VMEM, col_tiles == 1 (weight-stationary).
# --------------------------------------------------------------------------
def _ln_linear_kernel(x_ref, g_ref, b_ref, w_ref, bias_ref, o_ref, xn_ref):
    @pl.when(pl.program_id(1) == 0)
    def _():
        xn_ref[...] = _layernorm(x_ref[...], g_ref[...], b_ref[...]
                                 ).astype(xn_ref.dtype)
    o_ref[...] = (jnp.dot(xn_ref[...], w_ref[...],
                          preferred_element_type=jnp.float32)
                  + bias_ref[...]).astype(o_ref.dtype)


def ln_linear(x, g, b, w, bias, *, out_dtype=COMPUTE_DTYPE, tm=256, tn=512):
    B, T, C = x.shape
    N = w.shape[-1]
    M = B * T
    tm, Mp = _tile(M, tm)
    w_bytes = w.size * w.dtype.itemsize
    if 2 * w_bytes <= _VMEM_BUDGET // 3:      # weight-stationary (fetched once)
        tn_, Np = N, N
    else:
        tn_, Np = _tile(N, tn)

    xm = x.reshape(M, C)
    if Mp != M:
        xm = jnp.pad(xm, ((0, Mp - M), (0, 0)))
    if Np != N:
        w = jnp.pad(w, ((0, 0), (0, Np - N)))
        bias = jnp.pad(bias, (0, Np - N))

    out = pl.pallas_call(
        _ln_linear_kernel,
        out_shape=jax.ShapeDtypeStruct((Mp, Np), out_dtype),
        grid_spec=pltpu.PrefetchScalarGridSpec(
            num_scalar_prefetch=0,
            grid=(Mp // tm, Np // tn_),
            in_specs=[
                pl.BlockSpec((tm, C), lambda i, j: (i, 0)),
                pl.BlockSpec((1, C), lambda i, j: (0, 0)),
                pl.BlockSpec((1, C), lambda i, j: (0, 0)),
                pl.BlockSpec((C, tn_), lambda i, j: (0, j)),
                pl.BlockSpec((1, tn_), lambda i, j: (0, j)),
            ],
            out_specs=pl.BlockSpec((tm, tn_), lambda i, j: (i, j)),
            scratch_shapes=[pltpu.VMEM((tm, C), COMPUTE_DTYPE)],
        ),
        compiler_params=_compiler_params(("parallel", "arbitrary")),
    )(xm, g.reshape(1, C), b.reshape(1, C), w, bias.reshape(1, Np))
    if Mp != M or Np != N:
        out = out[:M, :N]
    return out.reshape(B, T, N)


# --------------------------------------------------------------------------
# Kernel 2: causal attention.  One batch element per grid step; all heads are
# processed in-kernel from the (T, 3C) qkv block (static column slices) and
# packed into one lane-dense (T, C) bf16 output block (no transposes).
# The 1/sqrt(D) scale is pre-folded into w_attn's q columns.
# --------------------------------------------------------------------------
def _attention_kernel(qkv_ref, o_ref, *, n_head):
    qkv = qkv_ref[0]                                   # (T, 3C) bf16
    T, three_c = qkv.shape
    C = three_c // 3
    D = C // n_head
    row = jax.lax.broadcasted_iota(jnp.int32, (T, T), 0)
    col = jax.lax.broadcasted_iota(jnp.int32, (T, T), 1)
    causal = col <= row
    outs = []
    for h in range(n_head):                            # static unroll over heads
        q = qkv[:, h * D:(h + 1) * D]
        k = qkv[:, C + h * D:C + (h + 1) * D]
        v = qkv[:, 2 * C + h * D:2 * C + (h + 1) * D]
        s = jax.lax.dot_general(q, k, (((1,), (1,)), ((), ())),
                                preferred_element_type=jnp.float32)   # (T, T)
        s = jnp.where(causal, s, -jnp.inf)
        m = jnp.max(s, axis=-1, keepdims=True)
        p = jnp.exp(s - m)
        l = jnp.sum(p, axis=-1, keepdims=True)
        p = p * pl.reciprocal(l, approx=True)          # EUP slot, ~free
        outs.append(jnp.dot(p.astype(v.dtype), v,
                            preferred_element_type=jnp.float32))      # (T, D)
    o_ref[0] = jnp.concatenate(outs, axis=-1).astype(o_ref.dtype)     # (T, C)


def causal_attention(qkv, *, n_head):
    # qkv: [B, T, 3C] bf16 -> [B, T, C] bf16
    # TODO(synk): flash-style KV tiling + causal block skipping for T >= ~1024.
    B, T, C3 = qkv.shape
    C = C3 // 3
    return pl.pallas_call(
        functools.partial(_attention_kernel, n_head=n_head),
        out_shape=jax.ShapeDtypeStruct((B, T, C), qkv.dtype),
        grid_spec=pltpu.PrefetchScalarGridSpec(
            num_scalar_prefetch=0,
            grid=(B,),
            in_specs=[pl.BlockSpec((1, T, C3), lambda b: (b, 0, 0))],
            out_specs=pl.BlockSpec((1, T, C), lambda b: (b, 0, 0)),
        ),
        compiler_params=_compiler_params(("parallel",)),
    )(qkv)


# --------------------------------------------------------------------------
# Kernel 3: attention output projection with fused residual add (f32 stream).
# --------------------------------------------------------------------------
def _proj_residual_kernel(y_ref, res_ref, w_ref, bias_ref, o_ref):
    o_ref[...] = (res_ref[...] + bias_ref[...]
                  + jnp.dot(y_ref[...], w_ref[...],
                            preferred_element_type=jnp.float32))


def proj_residual(y, x, w, bias, *, tm=256):
    B, T, C = x.shape
    M = B * T
    tm, Mp = _tile(M, tm)
    ym = y.reshape(M, C)
    xm = x.reshape(M, C)
    if Mp != M:
        ym = jnp.pad(ym, ((0, Mp - M), (0, 0)))
        xm = jnp.pad(xm, ((0, Mp - M), (0, 0)))
    out = pl.pallas_call(
        _proj_residual_kernel,
        out_shape=jax.ShapeDtypeStruct((Mp, C), jnp.float32),
        grid_spec=pltpu.PrefetchScalarGridSpec(
            num_scalar_prefetch=0,
            grid=(Mp // tm,),
            in_specs=[
                pl.BlockSpec((tm, C), lambda i: (i, 0)),
                pl.BlockSpec((tm, C), lambda i: (i, 0)),
                pl.BlockSpec((C, C), lambda i: (0, 0)),    # weight-stationary
                pl.BlockSpec((1, C), lambda i: (0, 0)),
            ],
            out_specs=pl.BlockSpec((tm, C), lambda i: (i, 0)),
        ),
        compiler_params=_compiler_params(("parallel",)),
    )(ym, xm, w, bias.reshape(1, C))
    return out[:M].reshape(B, T, C)


# --------------------------------------------------------------------------
# Kernel 4: fused LayerNorm + MLP (fc -> GELU -> proj) + residual add.
# grid = (row_tiles, hidden_tiles).  LN is computed once per row tile into a
# bf16 scratch; the hidden axis is a reduction into an f32 accumulator.  When
# the bf16 weights fit VMEM, hidden_tiles == 1 (weight-stationary).
# --------------------------------------------------------------------------
def _ln_mlp_kernel(x_ref, g_ref, b_ref, w1_ref, b1_ref, w2_ref, b2_ref,
                   o_ref, xn_ref, acc_ref):
    j = pl.program_id(1)

    @pl.when(j == 0)
    def _():
        x = x_ref[...]                                 # f32: LN input AND residual
        acc_ref[...] = x + b2_ref[...]                 # residual + proj bias
        xn_ref[...] = _layernorm(x, g_ref[...], b_ref[...]).astype(xn_ref.dtype)

    h = jnp.dot(xn_ref[...], w1_ref[...],
                preferred_element_type=jnp.float32) + b1_ref[...]
    h = 0.5 * h * (1.0 + jax.lax.erf(h * _GELU_C))     # exact GELU, f32 epilogue
    acc_ref[...] += jnp.dot(h.astype(w2_ref.dtype), w2_ref[...],
                            preferred_element_type=jnp.float32)

    @pl.when(j == pl.num_programs(1) - 1)
    def _():
        o_ref[...] = acc_ref[...]


def ln_mlp_residual(x, g, b, w1, b1, w2, b2, *, tm=256, th=512):
    B, T, C = x.shape
    H = w1.shape[-1]
    M = B * T
    tm, Mp = _tile(M, tm)
    w_bytes = (w1.size + w2.size) * w1.dtype.itemsize
    if 2 * w_bytes <= _VMEM_BUDGET // 2:
        th_ = H                                        # weight-stationary
    elif H % th == 0:
        th_ = th
    else:
        th_ = H                                        # TODO(synk): pad ragged hidden dims
    xm = x.reshape(M, C)
    if Mp != M:
        xm = jnp.pad(xm, ((0, Mp - M), (0, 0)))
    out = pl.pallas_call(
        _ln_mlp_kernel,
        out_shape=jax.ShapeDtypeStruct((Mp, C), jnp.float32),
        grid_spec=pltpu.PrefetchScalarGridSpec(
            num_scalar_prefetch=0,
            grid=(Mp // tm, H // th_),
            in_specs=[
                pl.BlockSpec((tm, C), lambda i, j: (i, 0)),
                pl.BlockSpec((1, C), lambda i, j: (0, 0)),
                pl.BlockSpec((1, C), lambda i, j: (0, 0)),
                pl.BlockSpec((C, th_), lambda i, j: (0, j)),
                pl.BlockSpec((1, th_), lambda i, j: (0, j)),
                pl.BlockSpec((th_, C), lambda i, j: (j, 0)),
                pl.BlockSpec((1, C), lambda i, j: (0, 0)),
            ],
            out_specs=pl.BlockSpec((tm, C), lambda i, j: (i, 0)),
            scratch_shapes=[pltpu.VMEM((tm, C), COMPUTE_DTYPE),
                            pltpu.VMEM((tm, C), jnp.float32)],
        ),
        compiler_params=_compiler_params(("parallel", "arbitrary")),
    )(xm, g.reshape(1, C), b.reshape(1, C),
      w1, b1.reshape(1, H), w2, b2.reshape(1, C))
    return out[:M].reshape(B, T, C)


# --------------------------------------------------------------------------
# Kernel 5: fused final LayerNorm + weight-tied lm_head (x @ wte^T, trans-B,
# no transposed copy, no bias).  LN computed once per row tile; vocab padded
# to a tile multiple instead of one giant full-axis block.
# --------------------------------------------------------------------------
def _lnf_lm_head_kernel(x_ref, g_ref, b_ref, wte_ref, o_ref, xn_ref):
    @pl.when(pl.program_id(1) == 0)
    def _():
        xn_ref[...] = _layernorm(x_ref[...], g_ref[...], b_ref[...]
                                 ).astype(xn_ref.dtype)
    o_ref[...] = jax.lax.dot_general(
        xn_ref[...], wte_ref[...],
        (((1,), (1,)), ((), ())),                      # contract C against C
        preferred_element_type=jnp.float32)


def lnf_lm_head(x, g, b, wte_cd, *, vocab_size, tm=512, tv=512):
    B, T, C = x.shape
    V = wte_cd.shape[0]
    M = B * T
    tm, Mp = _tile(M, tm)
    tv, Vp = _tile(V, tv)
    xm = x.reshape(M, C)
    if Mp != M:
        xm = jnp.pad(xm, ((0, Mp - M), (0, 0)))
    if Vp != V:
        # TODO(synk): pre-pad wte_lm once in prepare_params to avoid a per-call pad.
        wte_cd = jnp.pad(wte_cd, ((0, Vp - V), (0, 0)))
    out = pl.pallas_call(
        _lnf_lm_head_kernel,
        out_shape=jax.ShapeDtypeStruct((Mp, Vp), jnp.float32),
        grid_spec=pltpu.PrefetchScalarGridSpec(
            num_scalar_prefetch=0,
            grid=(Mp // tm, Vp // tv),
            in_specs=[
                pl.BlockSpec((tm, C), lambda i, j: (i, 0)),   # resident over vocab loop
                pl.BlockSpec((1, C), lambda i, j: (0, 0)),
                pl.BlockSpec((1, C), lambda i, j: (0, 0)),
                pl.BlockSpec((tv, C), lambda i, j: (j, 0)),
            ],
            out_specs=pl.BlockSpec((tm, tv), lambda i, j: (i, j)),
            scratch_shapes=[pltpu.VMEM((tm, C), COMPUTE_DTYPE)],
        ),
        compiler_params=_compiler_params(("parallel", "arbitrary")),
    )(xm, g.reshape(1, C), b.reshape(1, C), wte_cd)
    out = out[:M, :vocab_size]
    return out.reshape(B, T, vocab_size)


# ------------------------------ model (glue) --------------------------------

def gpt_forward(params, idx, cfg):
    B, T = idx.shape
    assert T <= cfg['block_size']
    pos = jnp.arange(T)
    # embedding gathers stay as XLA ops (no clean tiled Pallas gather needed here)
    x = (params['wte'][idx]
         + params['wpe'][pos // cfg['digits']][None]
         + params['abacus'][pos % cfg['digits']][None])
    for lp in params['blocks']:
        qkv = ln_linear(x, lp['ln1_g'], lp['ln1_b'], lp['w_attn'], lp['b_attn'],
                        out_dtype=COMPUTE_DTYPE)               # bf16 [B,T,3C]
        y = causal_attention(qkv, n_head=cfg['n_head'])        # bf16 [B,T,C]
        x = proj_residual(y, x, lp['w_proj'], lp['b_proj'])    # f32 residual
        x = ln_mlp_residual(x, lp['ln2_g'], lp['ln2_b'],
                            lp['w_fc'], lp['b_fc'],
                            lp['w_fcproj'], lp['b_fcproj'])    # f32 residual
    logits = lnf_lm_head(x, params['lnf_g'], params['lnf_b'], params['wte_lm'],
                         vocab_size=cfg['vocab_size'])
    # TODO(synk): targets / cross-entropy loss branch not implemented (logits only).
    return logits


# ------------------------------ parameters ----------------------------------

def init_params(key, cfg):
    C, V, L = cfg['n_embd'], cfg['vocab_size'], cfg['n_layer']
    std = 0.02
    proj_std = 0.02 * (2 * L) ** -0.5
    n_pos = int(math.ceil(cfg['block_size'] / cfg['digits']))
    keys = iter(jax.random.split(key, 3 + 4 * L))

    def normal(shape, s):
        return (s * jax.random.normal(next(keys), shape)).astype(jnp.float32)

    params = {
        'wte': normal((V, C), std),
        'wpe': normal((n_pos, C), std),
        'abacus': normal((cfg['digits'], C), std),
        'lnf_g': jnp.ones((C,), jnp.float32),
        'lnf_b': jnp.zeros((C,), jnp.float32),
        'blocks': [],
    }
    for _ in range(L):
        params['blocks'].append({
            'ln1_g': jnp.ones((C,), jnp.float32),
            'ln1_b': jnp.zeros((C,), jnp.float32),
            'w_attn': normal((C, 3 * C), std),
            'b_attn': jnp.zeros((3 * C,), jnp.float32),
            'w_proj': normal((C, C), proj_std),         # NANOGPT_SCALE_INIT
            'b_proj': jnp.zeros((C,), jnp.float32),
            'ln2_g': jnp.ones((C,), jnp.float32),
            'ln2_b': jnp.zeros((C,), jnp.float32),
            'w_fc': normal((C, 4 * C), std),
            'b_fc': jnp.zeros((4 * C,), jnp.float32),
            'w_fcproj': normal((4 * C, C), proj_std),   # NANOGPT_SCALE_INIT
            'b_fcproj': jnp.zeros((C,), jnp.float32),
        })
    return params


def prepare_params(p, cfg):
    """Inference-time parameter prep:
      * fold the attention 1/sqrt(D) scale into the q-columns of w_attn/b_attn,
      * cast MXU weight matrices to COMPUTE_DTYPE once (halves HBM traffic),
      * keep LN params, biases and the gather embedding table in float32,
      * 'wte_lm' is a bf16 copy of the weight-tied embedding used by the
        trans-B lm_head kernel (no [C, V] transpose is ever materialized)."""
    cd = COMPUTE_DTYPE
    C = cfg['n_embd']
    scale = 1.0 / math.sqrt(C // cfg['n_head'])
    out = {
        'wte': p['wte'],
        'wte_lm': p['wte'].astype(cd),
        'wpe': p['wpe'],
        'abacus': p['abacus'],
        'lnf_g': p['lnf_g'],
        'lnf_b': p['lnf_b'],
        'blocks': [],
    }
    for lp in p['blocks']:
        w_attn = lp['w_attn'].at[:, :C].multiply(scale)   # fold softmax scale
        b_attn = lp['b_attn'].at[:C].multiply(scale)
        out['blocks'].append({
            'ln1_g': lp['ln1_g'], 'ln1_b': lp['ln1_b'],
            'ln2_g': lp['ln2_g'], 'ln2_b': lp['ln2_b'],
            'w_attn': w_attn.astype(cd), 'b_attn': b_attn,
            'w_proj': lp['w_proj'].astype(cd), 'b_proj': lp['b_proj'],
            'w_fc': lp['w_fc'].astype(cd), 'b_fc': lp['b_fc'],
            'w_fcproj': lp['w_fcproj'].astype(cd), 'b_fcproj': lp['b_fcproj'],
        })
    return out


# ------------------ pure-JAX reference (same mixed precision) ----------------

def ref_forward(p, idx, cfg):
    cd = COMPUTE_DTYPE

    def ln(x, g, b):
        m = x.mean(-1, keepdims=True)
        v = ((x - m) ** 2).mean(-1, keepdims=True)
        return (x - m) * jax.lax.rsqrt(v + _LN_EPS) * g + b

    def mm(a, w):   # bf16 inputs, f32 accumulation (mirrors the MXU path)
        return jnp.dot(a.astype(cd), w, preferred_element_type=jnp.float32)

    B, T = idx.shape
    C, H = cfg['n_embd'], cfg['n_head']
    D = C // H
    pos = jnp.arange(T)
    x = (p['wte'][idx]
         + p['wpe'][pos // cfg['digits']][None]
         + p['abacus'][pos % cfg['digits']][None])
    for lp in p['blocks']:
        qkv = (mm(ln(x, lp['ln1_g'], lp['ln1_b']), lp['w_attn'])
               + lp['b_attn']).astype(cd)                 # bf16, like the kernel
        q, k, v = jnp.split(qkv, 3, axis=-1)
        q = q.reshape(B, T, H, D).transpose(0, 2, 1, 3)
        k = k.reshape(B, T, H, D).transpose(0, 2, 1, 3)
        v = v.reshape(B, T, H, D).transpose(0, 2, 1, 3)
        # NOTE: 1/sqrt(D) is already folded into w_attn/b_attn (prepare_params).
        s = jnp.einsum('bhqd,bhkd->bhqk', q, k,
                       preferred_element_type=jnp.float32)
        mask = jnp.tril(jnp.ones((T, T), bool))
        s = jnp.where(mask, s, -jnp.inf)
        pr = jax.nn.softmax(s, axis=-1)
        y = jnp.einsum('bhqk,bhkd->bhqd', pr.astype(cd), v,
                       preferred_element_type=jnp.float32)
        y = y.transpose(0, 2, 1, 3).reshape(B, T, C)
        x = x + lp['b_proj'] + mm(y, lp['w_proj'])
        h1 = mm(ln(x, lp['ln2_g'], lp['ln2_b']), lp['w_fc']) + lp['b_fc']
        h1 = 0.5 * h1 * (1.0 + jax.scipy.special.erf(h1 * _GELU_C))
        x = x + lp['b_fcproj'] + mm(h1, lp['w_fcproj'])
    x = ln(x, p['lnf_g'], p['lnf_b'])
    return jax.lax.dot_general(x.astype(cd), p['wte_lm'],
                               (((2,), (1,)), ((), ())),
                               preferred_element_type=jnp.float32)


# ---------------------------------- main -------------------------------------

if __name__ == "__main__":
    cfg = dict(vocab_size=64, block_size=16, digits=4,
               n_layer=2, n_head=4, n_embd=32)
    key = jax.random.PRNGKey(0)
    pkey, ikey = jax.random.split(key)
    params = prepare_params(init_params(pkey, cfg), cfg)

    B, T = 2, 8
    idx = jax.random.randint(ikey, (B, T), 0, cfg['vocab_size'], dtype=jnp.int32)

    fwd = jax.jit(lambda p, i: gpt_forward(p, i, cfg))
    logits = jax.block_until_ready(fwd(params, idx))

    assert logits.shape == (B, T, cfg['vocab_size'])
    ref = ref_forward(params, idx, cfg)
    np.testing.assert_allclose(np.asarray(logits), np.asarray(ref),
                               rtol=5e-3, atol=5e-3)
    print("KERNEL_OK")
</pallas_src>

<mosaic_0001>
module attributes {stable_mosaic.version = 11 : i64} {
  func.func @_attention_kernel(%arg0: i32, %arg1: memref<1x8x96xbf16, #tpu.memory_space<vmem>>, %arg2: memref<1x8x32xbf16, #tpu.memory_space<vmem>>) attributes {dimension_semantics = [#tpu.dimension_semantics<parallel>], iteration_bounds = array<i64: 2>, scalar_prefetch = 0 : i64, scratch_operands = 0 : i64, tpu.core_type = #tpu.core_type<tc>, window_params = [{transform_indices = @transform_0, window_bounds = array<i64: 1, 8, 96>}, {transform_indices = @transform_1, window_bounds = array<i64: 1, 8, 32>}]} {
    %c0 = arith.constant 0 : index
    %c0_0 = arith.constant 0 : index
    %c0_1 = arith.constant 0 : index
    %0 = vector.load %arg1[%c0, %c0_0, %c0_1] : memref<1x8x96xbf16, #tpu.memory_space<vmem>>, vector<1x8x96xbf16>
    %1 = vector.shape_cast %0 : vector<1x8x96xbf16> to vector<8x96xbf16>
    %2 = tpu.iota {dimensions = array<i32: 0>} : vector<8x8xi32>
    %3 = tpu.iota {dimensions = array<i32: 1>} : vector<8x8xi32>
    %4 = arith.cmpi sle, %3, %2 : vector<8x8xi32>
    %5 = vector.extract_strided_slice %1 {offsets = [0, 0], sizes = [8, 8], strides = [1, 1]} : vector<8x96xbf16> to vector<8x8xbf16>
    %6 = vector.extract_strided_slice %1 {offsets = [0, 32], sizes = [8, 8], strides = [1, 1]} : vector<8x96xbf16> to vector<8x8xbf16>
    %7 = vector.extract_strided_slice %1 {offsets = [0, 64], sizes = [8, 8], strides = [1, 1]} : vector<8x96xbf16> to vector<8x8xbf16>
    %cst = arith.constant dense<0.000000e+00> : vector<8x8xf32>
    %8 = tpu.matmul %5, %6, %cst {dimension_numbers = #tpu.dot_dimension_numbers<[1], [1], [0], [0], [0, 0, 1, 0], [], []>} : vector<8x8xbf16>, vector<8x8xbf16>, vector<8x8xf32> -> vector<8x8xf32>
    %cst_2 = arith.constant 0xFF800000 : f32
    %9 = vector.broadcast %cst_2 : f32 to vector<8x8xf32>
    %10 = arith.select %4, %8, %9 : vector<8x8xi1>, vector<8x8xf32>
    %cst_3 = arith.constant dense<0xFF800000> : vector<8xf32>
    %11 = vector.multi_reduction <maximumf>, %10, %cst_3 [1] : vector<8x8xf32> to vector<8xf32>
    %12 = vector.shape_cast %11 : vector<8xf32> to vector<8x1xf32>
    %13 = vector.broadcast %12 : vector<8x1xf32> to vector<8x8xf32>
    %14 = arith.subf %10, %13 : vector<8x8xf32>
    %15 = math.exp %14 : vector<8x8xf32>
    %cst_4 = arith.constant dense<0.000000e+00> : vector<8xf32>
    %16 = vector.multi_reduction <add>, %15, %cst_4 [1] : vector<8x8xf32> to vector<8xf32>
    %17 = vector.shape_cast %16 : vector<8xf32> to vector<8x1xf32>
    %18 = tpu.reciprocal %17 {approx = true} : vector<8x1xf32> -> vector<8x1xf32>
    %19 = vector.broadcast %18 : vector<8x1xf32> to vector<8x8xf32>
    %20 = arith.mulf %15, %19 : vector<8x8xf32>
    %21 = arith.truncf %20 : vector<8x8xf32> to vector<8x8xbf16>
    %cst_5 = arith.constant dense<0.000000e+00> : vector<8x8xf32>
    %22 = tpu.matmul %21, %7, %cst_5 {dimension_numbers = #tpu.dot_dimension_numbers<[1], [0], [0], [1], [0, 0, 1, 1], [], []>} : vector<8x8xbf16>, vector<8x8xbf16>, vector<8x8xf32> -> vector<8x8xf32>
    %23 = vector.extract_strided_slice %1 {offsets = [0, 8], sizes = [8, 8], strides = [1, 1]} : vector<8x96xbf16> to vector<8x8xbf16>
    %24 = vector.extract_strided_slice %1 {offsets = [0, 40], sizes = [8, 8], strides = [1, 1]} : vector<8x96xbf16> to vector<8x8xbf16>
    %25 = vector.extract_strided_slice %1 {offsets = [0, 72], sizes = [8, 8], strides = [1, 1]} : vector<8x96xbf16> to vector<8x8xbf16>
    %cst_6 = arith.constant dense<0.000000e+00> : vector<8x8xf32>
    %26 = tpu.matmul %23, %24, %cst_6 {dimension_numbers = #tpu.dot_dimension_numbers<[1], [1], [0], [0], [0, 0, 1, 0], [], []>} : vector<8x8xbf16>, vector<8x8xbf16>, vector<8x8xf32> -> vector<8x8xf32>
    %cst_7 = arith.constant 0xFF800000 : f32
    %27 = vector.broadcast %cst_7 : f32 to vector<8x8xf32>
    %28 = arith.select %4, %26, %27 : vector<8x8xi1>, vector<8x8xf32>
    %cst_8 = arith.constant dense<0xFF800000> : vector<8xf32>
    %29 = vector.multi_reduction <maximumf>, %28, %cst_8 [1] : vector<8x8xf32> to vector<8xf32>
    %30 = vector.shape_cast %29 : vector<8xf32> to vector<8x1xf32>
    %31 = vector.broadcast %30 : vector<8x1xf32> to vector<8x8xf32>
    %32 = arith.subf %28, %31 : vector<8x8xf32>
    %33 = math.exp %32 : vector<8x8xf32>
    %cst_9 = arith.constant dense<0.000000e+00> : vector<8xf32>
    %34 = vector.multi_reduction <add>, %33, %cst_9 [1] : vector<8x8xf32> to vector<8xf32>
    %35 = vector.shape_cast %34 : vector<8xf32> to vector<8x1xf32>
    %36 = tpu.reciprocal %35 {approx = true} : vector<8x1xf32> -> vector<8x1xf32>
    %37 = vector.broadcast %36 : vector<8x1xf32> to vector<8x8xf32>
    %38 = arith.mulf %33, %37 : vector<8x8xf32>
    %39 = arith.truncf %38 : vector<8x8xf32> to vector<8x8xbf16>
    %cst_10 = arith.constant dense<0.000000e+00> : vector<8x8xf32>
    %40 = tpu.matmul %39, %25, %cst_10 {dimension_numbers = #tpu.dot_dimension_numbers<[1], [0], [0], [1], [0, 0, 1, 1], [], []>} : vector<8x8xbf16>, vector<8x8xbf16>, vector<8x8xf32> -> vector<8x8xf32>
    %41 = vector.extract_strided_slice %1 {offsets = [0, 16], sizes = [8, 8], strides = [1, 1]} : vector<8x96xbf16> to vector<8x8xbf16>
    %42 = vector.extract_strided_slice %1 {offsets = [0, 48], sizes = [8, 8], strides = [1, 1]} : vector<8x96xbf16> to vector<8x8xbf16>
    %43 = vector.extract_strided_slice %1 {offsets = [0, 80], sizes = [8, 8], strides = [1, 1]} : vector<8x96xbf16> to vector<8x8xbf16>
    %cst_11 = arith.constant dense<0.000000e+00> : vector<8x8xf32>
    %44 = tpu.matmul %41, %42, %cst_11 {dimension_numbers = #tpu.dot_dimension_numbers<[1], [1], [0], [0], [0, 0, 1, 0], [], []>} : vector<8x8xbf16>, vector<8x8xbf16>, vector<8x8xf32> -> vector<8x8xf32>
    %cst_12 = arith.constant 0xFF800000 : f32
    %45 = vector.broadcast %cst_12 : f32 to vector<8x8xf32>
    %46 = arith.select %4, %44, %45 : vector<8x8xi1>, vector<8x8xf32>
    %cst_13 = arith.constant dense<0xFF800000> : vector<8xf32>
    %47 = vector.multi_reduction <maximumf>, %46, %cst_13 [1] : vector<8x8xf32> to vector<8xf32>
    %48 = vector.shape_cast %47 : vector<8xf32> to vector<8x1xf32>
    %49 = vector.broadcast %48 : vector<8x1xf32> to vector<8x8xf32>
    %50 = arith.subf %46, %49 : vector<8x8xf32>
    %51 = math.exp %50 : vector<8x8xf32>
    %cst_14 = arith.constant dense<0.000000e+00> : vector<8xf32>
    %52 = vector.multi_reduction <add>, %51, %cst_14 [1] : vector<8x8xf32> to vector<8xf32>
    %53 = vector.shape_cast %52 : vector<8xf32> to vector<8x1xf32>
    %54 = tpu.reciprocal %53 {approx = true} : vector<8x1xf32> -> vector<8x1xf32>
    %55 = vector.broadcast %54 : vector<8x1xf32> to vector<8x8xf32>
    %56 = arith.mulf %51, %55 : vector<8x8xf32>
    %57 = arith.truncf %56 : vector<8x8xf32> to vector<8x8xbf16>
    %cst_15 = arith.constant dense<0.000000e+00> : vector<8x8xf32>
    %58 = tpu.matmul %57, %43, %cst_15 {dimension_numbers = #tpu.dot_dimension_numbers<[1], [0], [0], [1], [0, 0, 1, 1], [], []>} : vector<8x8xbf16>, vector<8x8xbf16>, vector<8x8xf32> -> vector<8x8xf32>
    %59 = vector.extract_strided_slice %1 {offsets = [0, 24], sizes = [8, 8], strides = [1, 1]} : vector<8x96xbf16> to vector<8x8xbf16>
    %60 = vector.extract_strided_slice %1 {offsets = [0, 56], sizes = [8, 8], strides = [1, 1]} : vector<8x96xbf16> to vector<8x8xbf16>
    %61 = vector.extract_strided_slice %1 {offsets = [0, 88], sizes = [8, 8], strides = [1, 1]} : vector<8x96xbf16> to vector<8x8xbf16>
    %cst_16 = arith.constant dense<0.000000e+00> : vector<8x8xf32>
    %62 = tpu.matmul %59, %60, %cst_16 {dimension_numbers = #tpu.dot_dimension_numbers<[1], [1], [0], [0], [0, 0, 1, 0], [], []>} : vector<8x8xbf16>, vector<8x8xbf16>, vector<8x8xf32> -> vector<8x8xf32>
    %cst_17 = arith.constant 0xFF800000 : f32
    %63 = vector.broadcast %cst_17 : f32 to vector<8x8xf32>
    %64 = arith.select %4, %62, %63 : vector<8x8xi1>, vector<8x8xf32>
    %cst_18 = arith.constant dense<0xFF800000> : vector<8xf32>
    %65 = vector.multi_reduction <maximumf>, %64, %cst_18 [1] : vector<8x8xf32> to vector<8xf32>
    %66 = vector.shape_cast %65 : vector<8xf32> to vector<8x1xf32>
    %67 = vector.broadcast %66 : vector<8x1xf32> to vector<8x8xf32>
    %68 = arith.subf %64, %67 : vector<8x8xf32>
    %69 = math.exp %68 : vector<8x8xf32>
    %cst_19 = arith.constant dense<0.000000e+00> : vector<8xf32>
    %70 = vector.multi_reduction <add>, %69, %cst_19 [1] : vector<8x8xf32> to vector<8xf32>
    %71 = vector.shape_cast %70 : vector<8xf32> to vector<8x1xf32>
    %72 = tpu.reciprocal %71 {approx = true} : vector<8x1xf32> -> vector<8x1xf32>
    %73 = vector.broadcast %72 : vector<8x1xf32> to vector<8x8xf32>
    %74 = arith.mulf %69, %73 : vector<8x8xf32>
    %75 = arith.truncf %74 : vector<8x8xf32> to vector<8x8xbf16>
    %cst_20 = arith.constant dense<0.000000e+00> : vector<8x8xf32>
    %76 = tpu.matmul %75, %61, %cst_20 {dimension_numbers = #tpu.dot_dimension_numbers<[1], [0], [0], [1], [0, 0, 1, 1], [], []>} : vector<8x8xbf16>, vector<8x8xbf16>, vector<8x8xf32> -> vector<8x8xf32>
    %77 = tpu.concatenate %22, %40, %58, %76 in 1 : vector<8x8xf32>, vector<8x8xf32>, vector<8x8xf32>, vector<8x8xf32> -> vector<8x32xf32>
    %78 = arith.truncf %77 : vector<8x32xf32> to vector<8x32xbf16>
    %c0_21 = arith.constant 0 : index
    %c0_22 = arith.constant 0 : index
    %c0_23 = arith.constant 0 : index
    %79 = vector.load %arg2[%c0_21, %c0_22, %c0_23] : memref<1x8x32xbf16, #tpu.memory_space<vmem>>, vector<1x8x32xbf16>
    %80 = vector.shape_cast %79 : vector<1x8x32xbf16> to vector<8x32xbf16>
    %81 = vector.shape_cast %78 : vector<8x32xbf16> to vector<1x8x32xbf16>
    tpu.vector_store %arg2[%c0_21, %c0_22, %c0_23], %81 {strides = array<i32>} : memref<1x8x32xbf16, #tpu.memory_space<vmem>>, vector<1x8x32xbf16>,
    return
  }
  func.func @transform_0(%arg0: i32) -> (i32, i32, i32) {
    %c0_i32 = arith.constant 0 : i32
    %c0_i32_0 = arith.constant 0 : i32
    %c0_i32_1 = arith.constant 0 : i32
    return %arg0, %c0_i32, %c0_i32_0 : i32, i32, i32
  }
  func.func @transform_1(%arg0: i32) -> (i32, i32, i32) {
    %c0_i32 = arith.constant 0 : i32
    %c0_i32_0 = arith.constant 0 : i32
    %c0_i32_1 = arith.constant 0 : i32
    return %arg0, %c0_i32, %c0_i32_0 : i32, i32, i32
  }
}

module attributes {stable_mosaic.version = 11 : i64} {
  func.func @_ln_linear_kernel(%arg0: i32, %arg1: i32, %arg2: memref<16x32xf32, #tpu.memory_space<vmem>>, %arg3: memref<1x32xf32, #tpu.memory_space<vmem>>, %arg4: memref<1x32xf32, #tpu.memory_space<vmem>>, %arg5: memref<32x96xbf16, #tpu.memory_space<vmem>>, %arg6: memref<1x96xf32, #tpu.memory_space<vmem>>, %arg7: memref<16x96xbf16, #tpu.memory_space<vmem>>, %arg8: memref<16x32xbf16, #tpu.memory_space<vmem>>) attributes {dimension_semantics = [#tpu.dimension_semantics<parallel>, #tpu.dimension_semantics<arbitrary>], iteration_bounds = array<i64: 1, 1>, scalar_prefetch = 0 : i64, scratch_operands = 1 : i64, tpu.core_type = #tpu.core_type<tc>, window_params = [{transform_indices = @transform_0, window_bounds = array<i64: 16, 32>}, {pipeline_mode = #tpu.pipeline_mode<synchronous>, transform_indices = @transform_1, window_bounds = array<i64: 1, 32>}, {pipeline_mode = #tpu.pipeline_mode<synchronous>, transform_indices = @transform_2, window_bounds = array<i64: 1, 32>}, {transform_indices = @transform_3, window_bounds = array<i64: 32, 96>}, {transform_indices = @transform_4, window_bounds = array<i64: 1, 96>}, {transform_indices = @transform_5, window_bounds = array<i64: 16, 96>}]} {
    %c0_i32 = arith.constant 0 : i32
    %0 = arith.cmpi eq, %arg1, %c0_i32 : i32
    %1 = arith.extui %0 : i1 to i32
    %c0_i32_0 = arith.constant 0 : i32
    %2 = arith.cmpi ne, %1, %c0_i32_0 : i32
    scf.if %2 {
      %c0_8 = arith.constant 0 : index
      %c0_9 = arith.constant 0 : index
      %11 = vector.load %arg2[%c0_8, %c0_9] : memref<16x32xf32, #tpu.memory_space<vmem>>, vector<16x32xf32>
      %c0_10 = arith.constant 0 : index
      %c0_11 = arith.constant 0 : index
      %12 = vector.load %arg3[%c0_10, %c0_11] : memref<1x32xf32, #tpu.memory_space<vmem>>, vector<1x32xf32>
      %c0_12 = arith.constant 0 : index
      %c0_13 = arith.constant 0 : index
      %13 = vector.load %arg4[%c0_12, %c0_13] : memref<1x32xf32, #tpu.memory_space<vmem>>, vector<1x32xf32>
      %cst_14 = arith.constant dense<0.000000e+00> : vector<16xf32>
      %14 = vector.multi_reduction <add>, %11, %cst_14 [1] : vector<16x32xf32> to vector<16xf32>
      %15 = vector.shape_cast %14 : vector<16xf32> to vector<16x1xf32>
      %cst_15 = arith.constant 3.200000e+01 : f32
      %16 = vector.broadcast %cst_15 : f32 to vector<16x1xf32>
      %17 = arith.divf %15, %16 : vector<16x1xf32>
      %18 = vector.broadcast %17 : vector<16x1xf32> to vector<16x32xf32>
      %19 = arith.subf %11, %18 : vector<16x32xf32>
      %20 = arith.mulf %19, %19 : vector<16x32xf32>
      %cst_16 = arith.constant dense<0.000000e+00> : vector<16xf32>
      %21 = vector.multi_reduction <add>, %20, %cst_16 [1] : vector<16x32xf32> to vector<16xf32>
      %22 = vector.shape_cast %21 : vector<16xf32> to vector<16x1xf32>
      %cst_17 = arith.constant 3.200000e+01 : f32
      %23 = vector.broadcast %cst_17 : f32 to vector<16x1xf32>
      %24 = arith.divf %22, %23 : vector<16x1xf32>
      %cst_18 = arith.constant 9.99999974E-6 : f32
      %25 = vector.broadcast %cst_18 : f32 to vector<16x1xf32>
      %26 = arith.addf %24, %25 : vector<16x1xf32>
      %27 = math.rsqrt %26 : vector<16x1xf32>
      %28 = vector.broadcast %27 : vector<16x1xf32> to vector<16x32xf32>
      %29 = arith.mulf %19, %28 : vector<16x32xf32>
      %30 = vector.broadcast %12 : vector<1x32xf32> to vector<16x32xf32>
      %31 = arith.mulf %29, %30 : vector<16x32xf32>
      %32 = vector.broadcast %13 : vector<1x32xf32> to vector<16x32xf32>
      %33 = arith.addf %31, %32 : vector<16x32xf32>
      %34 = arith.truncf %33 : vector<16x32xf32> to vector<16x32xbf16>
      %c0_19 = arith.constant 0 : index
      %c0_20 = arith.constant 0 : index
      %35 = vector.load %arg8[%c0_19, %c0_20] : memref<16x32xbf16, #tpu.memory_space<vmem>>, vector<16x32xbf16>
      tpu.vector_store %arg8[%c0_19, %c0_20], %34 {strides = array<i32>} : memref<16x32xbf16, #tpu.memory_space<vmem>>, vector<16x32xbf16>,
    } else {
    }
    %c0 = arith.constant 0 : index
    %c0_1 = arith.constant 0 : index
    %3 = vector.load %arg8[%c0, %c0_1] : memref<16x32xbf16, #tpu.memory_space<vmem>>, vector<16x32xbf16>
    %c0_2 = arith.constant 0 : index
    %c0_3 = arith.constant 0 : index
    %4 = vector.load %arg5[%c0_2, %c0_3] : memref<32x96xbf16, #tpu.memory_space<vmem>>, vector<32x96xbf16>
    %cst = arith.constant dense<0.000000e+00> : vector<16x96xf32>
    %5 = tpu.matmul %3, %4, %cst {dimension_numbers = #tpu.dot_dimension_numbers<[1], [0], [0], [1], [0, 0, 1, 1], [], []>} : vector<16x32xbf16>, vector<32x96xbf16>, vector<16x96xf32> -> vector<16x96xf32>
    %c0_4 = arith.constant 0 : index
    %c0_5 = arith.constant 0 : index
    %6 = vector.load %arg6[%c0_4, %c0_5] : memref<1x96xf32, #tpu.memory_space<vmem>>, vector<1x96xf32>
    %7 = vector.broadcast %6 : vector<1x96xf32> to vector<16x96xf32>
    %8 = arith.addf %5, %7 : vector<16x96xf32>
    %9 = arith.truncf %8 : vector<16x96xf32> to vector<16x96xbf16>
    %c0_6 = arith.constant 0 : index
    %c0_7 = arith.constant 0 : index
    %10 = vector.load %arg7[%c0_6, %c0_7] : memref<16x96xbf16, #tpu.memory_space<vmem>>, vector<16x96xbf16>
    tpu.vector_store %arg7[%c0_6, %c0_7], %9 {strides = array<i32>} : memref<16x96xbf16, #tpu.memory_space<vmem>>, vector<16x96xbf16>,
    return
  }
  func.func @transform_0(%arg0: i32, %arg1: i32) -> (i32, i32) {
    %c0_i32 = arith.constant 0 : i32
    %c0_i32_0 = arith.constant 0 : i32
    return %arg0, %c0_i32 : i32, i32
  }
  func.func @transform_1(%arg0: i32, %arg1: i32) -> (i32, i32) {
    %c0_i32 = arith.constant 0 : i32
    %c0_i32_0 = arith.constant 0 : i32
    %c0_i32_1 = arith.constant 0 : i32
    return %c0_i32, %c0_i32_0 : i32, i32
  }
  func.func @transform_2(%arg0: i32, %arg1: i32) -> (i32, i32) {
    %c0_i32 = arith.constant 0 : i32
    %c0_i32_0 = arith.constant 0 : i32
    %c0_i32_1 = arith.constant 0 : i32
    return %c0_i32, %c0_i32_0 : i32, i32
  }
  func.func @transform_3(%arg0: i32, %arg1: i32) -> (i32, i32) {
    %c0_i32 = arith.constant 0 : i32
    %c0_i32_0 = arith.constant 0 : i32
    return %c0_i32, %arg1 : i32, i32
  }
  func.func @transform_4(%arg0: i32, %arg1: i32) -> (i32, i32) {
    %c0_i32 = arith.constant 0 : i32
    %c0_i32_0 = arith.constant 0 : i32
    return %c0_i32, %arg1 : i32, i32
  }
  func.func @transform_5(%arg0: i32, %arg1: i32) -> (i32, i32) {
    %c0_i32 = arith.constant 0 : i32
    return %arg0, %arg1 : i32, i32
  }
}

module attributes {stable_mosaic.version = 11 : i64} {
  func.func @_proj_residual_kernel(%arg0: i32, %arg1: memref<16x32xbf16, #tpu.memory_space<vmem>>, %arg2: memref<16x32xf32, #tpu.memory_space<vmem>>, %arg3: memref<32x32xbf16, #tpu.memory_space<vmem>>, %arg4: memref<1x32xf32, #tpu.memory_space<vmem>>, %arg5: memref<16x32xf32, #tpu.memory_space<vmem>>) attributes {dimension_semantics = [#tpu.dimension_semantics<parallel>], iteration_bounds = array<i64: 1>, scalar_prefetch = 0 : i64, scratch_operands = 0 : i64, tpu.core_type = #tpu.core_type<tc>, window_params = [{transform_indices = @transform_0, window_bounds = array<i64: 16, 32>}, {transform_indices = @transform_1, window_bounds = array<i64: 16, 32>}, {pipeline_mode = #tpu.pipeline_mode<synchronous>, transform_indices = @transform_2, window_bounds = array<i64: 32, 32>}, {pipeline_mode = #tpu.pipeline_mode<synchronous>, transform_indices = @transform_3, window_bounds = array<i64: 1, 32>}, {transform_indices = @transform_4, window_bounds = array<i64: 16, 32>}]} {
    %c0 = arith.constant 0 : index
    %c0_0 = arith.constant 0 : index
    %0 = vector.load %arg2[%c0, %c0_0] : memref<16x32xf32, #tpu.memory_space<vmem>>, vector<16x32xf32>
    %c0_1 = arith.constant 0 : index
    %c0_2 = arith.constant 0 : index
    %1 = vector.load %arg4[%c0_1, %c0_2] : memref<1x32xf32, #tpu.memory_space<vmem>>, vector<1x32xf32>
    %2 = vector.broadcast %1 : vector<1x32xf32> to vector<16x32xf32>
    %3 = arith.addf %0, %2 : vector<16x32xf32>
    %c0_3 = arith.constant 0 : index
    %c0_4 = arith.constant 0 : index
    %4 = vector.load %arg1[%c0_3, %c0_4] : memref<16x32xbf16, #tpu.memory_space<vmem>>, vector<16x32xbf16>
    %c0_5 = arith.constant 0 : index
    %c0_6 = arith.constant 0 : index
    %5 = vector.load %arg3[%c0_5, %c0_6] : memref<32x32xbf16, #tpu.memory_space<vmem>>, vector<32x32xbf16>
    %cst = arith.constant dense<0.000000e+00> : vector<16x32xf32>
    %6 = tpu.matmul %4, %5, %cst {dimension_numbers = #tpu.dot_dimension_numbers<[1], [0], [0], [1], [0, 0, 1, 1], [], []>} : vector<16x32xbf16>, vector<32x32xbf16>, vector<16x32xf32> -> vector<16x32xf32>
    %7 = arith.addf %3, %6 : vector<16x32xf32>
    %c0_7 = arith.constant 0 : index
    %c0_8 = arith.constant 0 : index
    %8 = vector.load %arg5[%c0_7, %c0_8] : memref<16x32xf32, #tpu.memory_space<vmem>>, vector<16x32xf32>
    tpu.vector_store %arg5[%c0_7, %c0_8], %7 {strides = array<i32>} : memref<16x32xf32, #tpu.memory_space<vmem>>, vector<16x32xf32>,
    return
  }
  func.func @transform_0(%arg0: i32) -> (i32, i32) {
    %c0_i32 = arith.constant 0 : i32
    %c0_i32_0 = arith.constant 0 : i32
    return %arg0, %c0_i32 : i32, i32
  }
  func.func @transform_1(%arg0: i32) -> (i32, i32) {
    %c0_i32 = arith.constant 0 : i32
    %c0_i32_0 = arith.constant 0 : i32
    return %arg0, %c0_i32 : i32, i32
  }
  func.func @transform_2(%arg0: i32) -> (i32, i32) {
    %c0_i32 = arith.constant 0 : i32
    %c0_i32_0 = arith.constant 0 : i32
    %c0_i32_1 = arith.constant 0 : i32
    return %c0_i32, %c0_i32_0 : i32, i32
  }
  func.func @transform_3(%arg0: i32) -> (i32, i32) {
    %c0_i32 = arith.constant 0 : i32
    %c0_i32_0 = arith.constant 0 : i32
    %c0_i32_1 = arith.constant 0 : i32
    return %c0_i32, %c0_i32_0 : i32, i32
  }
  func.func @transform_4(%arg0: i32) -> (i32, i32) {
    %c0_i32 = arith.constant 0 : i32
    %c0_i32_0 = arith.constant 0 : i32
    return %arg0, %c0_i32 : i32, i32
  }
}

module attributes {stable_mosaic.version = 11 : i64} {
  func.func @_ln_mlp_kernel(%arg0: i32, %arg1: i32, %arg2: memref<16x32xf32, #tpu.memory_space<vmem>>, %arg3: memref<1x32xf32, #tpu.memory_space<vmem>>, %arg4: memref<1x32xf32, #tpu.memory_space<vmem>>, %arg5: memref<32x128xbf16, #tpu.memory_space<vmem>>, %arg6: memref<1x128xf32, #tpu.memory_space<vmem>>, %arg7: memref<128x32xbf16, #tpu.memory_space<vmem>>, %arg8: memref<1x32xf32, #tpu.memory_space<vmem>>, %arg9: memref<16x32xf32, #tpu.memory_space<vmem>>, %arg10: memref<16x32xbf16, #tpu.memory_space<vmem>>, %arg11: memref<16x32xf32, #tpu.memory_space<vmem>>) attributes {dimension_semantics = [#tpu.dimension_semantics<parallel>, #tpu.dimension_semantics<arbitrary>], iteration_bounds = array<i64: 1, 1>, scalar_prefetch = 0 : i64, scratch_operands = 2 : i64, tpu.core_type = #tpu.core_type<tc>, window_params = [{transform_indices = @transform_0, window_bounds = array<i64: 16, 32>}, {pipeline_mode = #tpu.pipeline_mode<synchronous>, transform_indices = @transform_1, window_bounds = array<i64: 1, 32>}, {pipeline_mode = #tpu.pipeline_mode<synchronous>, transform_indices = @transform_2, window_bounds = array<i64: 1, 32>}, {transform_indices = @transform_3, window_bounds = array<i64: 32, 128>}, {transform_indices = @transform_4, window_bounds = array<i64: 1, 128>}, {transform_indices = @transform_5, window_bounds = array<i64: 128, 32>}, {pipeline_mode = #tpu.pipeline_mode<synchronous>, transform_indices = @transform_6, window_bounds = array<i64: 1, 32>}, {transform_indices = @transform_7, window_bounds = array<i64: 16, 32>}]} {
    %c0_i32 = arith.constant 0 : i32
    %0 = arith.cmpi eq, %arg1, %c0_i32 : i32
    %1 = arith.extui %0 : i1 to i32
    %c0_i32_0 = arith.constant 0 : i32
    %2 = arith.cmpi ne, %1, %c0_i32_0 : i32
    scf.if %2 {
      %c0_18 = arith.constant 0 : index
      %c0_19 = arith.constant 0 : index
      %26 = vector.load %arg2[%c0_18, %c0_19] : memref<16x32xf32, #tpu.memory_space<vmem>>, vector<16x32xf32>
      %c0_20 = arith.constant 0 : index
      %c0_21 = arith.constant 0 : index
      %27 = vector.load %arg8[%c0_20, %c0_21] : memref<1x32xf32, #tpu.memory_space<vmem>>, vector<1x32xf32>
      %28 = vector.broadcast %27 : vector<1x32xf32> to vector<16x32xf32>
      %29 = arith.addf %26, %28 : vector<16x32xf32>
      %c0_22 = arith.constant 0 : index
      %c0_23 = arith.constant 0 : index
      %30 = vector.load %arg11[%c0_22, %c0_23] : memref<16x32xf32, #tpu.memory_space<vmem>>, vector<16x32xf32>
      tpu.vector_store %arg11[%c0_22, %c0_23], %29 {strides = array<i32>} : memref<16x32xf32, #tpu.memory_space<vmem>>, vector<16x32xf32>,
      %c0_24 = arith.constant 0 : index
      %c0_25 = arith.constant 0 : index
      %31 = vector.load %arg3[%c0_24, %c0_25] : memref<1x32xf32, #tpu.memory_space<vmem>>, vector<1x32xf32>
      %c0_26 = arith.constant 0 : index
      %c0_27 = arith.constant 0 : index
      %32 = vector.load %arg4[%c0_26, %c0_27] : memref<1x32xf32, #tpu.memory_space<vmem>>, vector<1x32xf32>
      %cst_28 = arith.constant dense<0.000000e+00> : vector<16xf32>
      %33 = vector.multi_reduction <add>, %26, %cst_28 [1] : vector<16x32xf32> to vector<16xf32>
      %34 = vector.shape_cast %33 : vector<16xf32> to vector<16x1xf32>
      %cst_29 = arith.constant 3.200000e+01 : f32
      %35 = vector.broadcast %cst_29 : f32 to vector<16x1xf32>
      %36 = arith.divf %34, %35 : vector<16x1xf32>
      %37 = vector.broadcast %36 : vector<16x1xf32> to vector<16x32xf32>
      %38 = arith.subf %26, %37 : vector<16x32xf32>
      %39 = arith.mulf %38, %38 : vector<16x32xf32>
      %cst_30 = arith.constant dense<0.000000e+00> : vector<16xf32>
      %40 = vector.multi_reduction <add>, %39, %cst_30 [1] : vector<16x32xf32> to vector<16xf32>
      %41 = vector.shape_cast %40 : vector<16xf32> to vector<16x1xf32>
      %cst_31 = arith.constant 3.200000e+01 : f32
      %42 = vector.broadcast %cst_31 : f32 to vector<16x1xf32>
      %43 = arith.divf %41, %42 : vector<16x1xf32>
      %cst_32 = arith.constant 9.99999974E-6 : f32
      %44 = vector.broadcast %cst_32 : f32 to vector<16x1xf32>
      %45 = arith.addf %43, %44 : vector<16x1xf32>
      %46 = math.rsqrt %45 : vector<16x1xf32>
      %47 = vector.broadcast %46 : vector<16x1xf32> to vector<16x32xf32>
      %48 = arith.mulf %38, %47 : vector<16x32xf32>
      %49 = vector.broadcast %31 : vector<1x32xf32> to vector<16x32xf32>
      %50 = arith.mulf %48, %49 : vector<16x32xf32>
      %51 = vector.broadcast %32 : vector<1x32xf32> to vector<16x32xf32>
      %52 = arith.addf %50, %51 : vector<16x32xf32>
      %53 = arith.truncf %52 : vector<16x32xf32> to vector<16x32xbf16>
      %c0_33 = arith.constant 0 : index
      %c0_34 = arith.constant 0 : index
      %54 = vector.load %arg10[%c0_33, %c0_34] : memref<16x32xbf16, #tpu.memory_space<vmem>>, vector<16x32xbf16>
      tpu.vector_store %arg10[%c0_33, %c0_34], %53 {strides = array<i32>} : memref<16x32xbf16, #tpu.memory_space<vmem>>, vector<16x32xbf16>,
    } else {
    }
    %c0 = arith.constant 0 : index
    %c0_1 = arith.constant 0 : index
    %3 = vector.load %arg10[%c0, %c0_1] : memref<16x32xbf16, #tpu.memory_space<vmem>>, vector<16x32xbf16>
    %c0_2 = arith.constant 0 : index
    %c0_3 = arith.constant 0 : index
    %4 = vector.load %arg5[%c0_2, %c0_3] : memref<32x128xbf16, #tpu.memory_space<vmem>>, vector<32x128xbf16>
    %cst = arith.constant dense<0.000000e+00> : vector<16x128xf32>
    %5 = tpu.matmul %3, %4, %cst {dimension_numbers = #tpu.dot_dimension_numbers<[1], [0], [0], [1], [0, 0, 1, 1], [], []>} : vector<16x32xbf16>, vector<32x128xbf16>, vector<16x128xf32> -> vector<16x128xf32>
    %c0_4 = arith.constant 0 : index
    %c0_5 = arith.constant 0 : index
    %6 = vector.load %arg6[%c0_4, %c0_5] : memref<1x128xf32, #tpu.memory_space<vmem>>, vector<1x128xf32>
    %7 = vector.broadcast %6 : vector<1x128xf32> to vector<16x128xf32>
    %8 = arith.addf %5, %7 : vector<16x128xf32>
    %cst_6 = arith.constant 5.000000e-01 : f32
    %9 = vector.broadcast %cst_6 : f32 to vector<16x128xf32>
    %10 = arith.mulf %9, %8 : vector<16x128xf32>
    %cst_7 = arith.constant 0.707106769 : f32
    %11 = vector.broadcast %cst_7 : f32 to vector<16x128xf32>
    %12 = arith.mulf %8, %11 : vector<16x128xf32>
    %13 = math.erf %12 : vector<16x128xf32>
    %cst_8 = arith.constant 1.000000e+00 : f32
    %14 = vector.broadcast %cst_8 : f32 to vector<16x128xf32>
    %15 = arith.addf %14, %13 : vector<16x128xf32>
    %16 = arith.mulf %10, %15 : vector<16x128xf32>
    %c0_9 = arith.constant 0 : index
    %c0_10 = arith.constant 0 : index
    %17 = vector.load %arg11[%c0_9, %c0_10] : memref<16x32xf32, #tpu.memory_space<vmem>>, vector<16x32xf32>
    %18 = arith.truncf %16 : vector<16x128xf32> to vector<16x128xbf16>
    %c0_11 = arith.constant 0 : index
    %c0_12 = arith.constant 0 : index
    %19 = vector.load %arg7[%c0_11, %c0_12] : memref<128x32xbf16, #tpu.memory_space<vmem>>, vector<128x32xbf16>
    %cst_13 = arith.constant dense<0.000000e+00> : vector<16x32xf32>
    %20 = tpu.matmul %18, %19, %cst_13 {dimension_numbers = #tpu.dot_dimension_numbers<[1], [0], [0], [1], [0, 0, 1, 1], [], []>} : vector<16x128xbf16>, vector<128x32xbf16>, vector<16x32xf32> -> vector<16x32xf32>
    %21 = arith.addf %17, %20 : vector<16x32xf32>
    %c0_14 = arith.constant 0 : index
    %c0_15 = arith.constant 0 : index
    %22 = vector.load %arg11[%c0_14, %c0_15] : memref<16x32xf32, #tpu.memory_space<vmem>>, vector<16x32xf32>
    tpu.vector_store %arg11[%c0_14, %c0_15], %21 {strides = array<i32>} : memref<16x32xf32, #tpu.memory_space<vmem>>, vector<16x32xf32>,
    %c0_i32_16 = arith.constant 0 : i32
    %23 = arith.cmpi eq, %arg1, %c0_i32_16 : i32
    %24 = arith.extui %23 : i1 to i32
    %c0_i32_17 = arith.constant 0 : i32
    %25 = arith.cmpi ne, %24, %c0_i32_17 : i32
    scf.if %25 {
      %c0_18 = arith.constant 0 : index
      %c0_19 = arith.constant 0 : index
      %26 = vector.load %arg11[%c0_18, %c0_19] : memref<16x32xf32, #tpu.memory_space<vmem>>, vector<16x32xf32>
      %c0_20 = arith.constant 0 : index
      %c0_21 = arith.constant 0 : index
      %27 = vector.load %arg9[%c0_20, %c0_21] : memref<16x32xf32, #tpu.memory_space<vmem>>, vector<16x32xf32>
      tpu.vector_store %arg9[%c0_20, %c0_21], %26 {strides = array<i32>} : memref<16x32xf32, #tpu.memory_space<vmem>>, vector<16x32xf32>,
    } else {
    }
    return
  }
  func.func @transform_0(%arg0: i32, %arg1: i32) -> (i32, i32) {
    %c0_i32 = arith.constant 0 : i32
    %c0_i32_0 = arith.constant 0 : i32
    return %arg0, %c0_i32 : i32, i32
  }
  func.func @transform_1(%arg0: i32, %arg1: i32) -> (i32, i32) {
    %c0_i32 = arith.constant 0 : i32
    %c0_i32_0 = arith.constant 0 : i32
    %c0_i32_1 = arith.constant 0 : i32
    return %c0_i32, %c0_i32_0 : i32, i32
  }
  func.func @transform_2(%arg0: i32, %arg1: i32) -> (i32, i32) {
    %c0_i32 = arith.constant 0 : i32
    %c0_i32_0 = arith.constant 0 : i32
    %c0_i32_1 = arith.constant 0 : i32
    return %c0_i32, %c0_i32_0 : i32, i32
  }
  func.func @transform_3(%arg0: i32, %arg1: i32) -> (i32, i32) {
    %c0_i32 = arith.constant 0 : i32
    %c0_i32_0 = arith.constant 0 : i32
    return %c0_i32, %arg1 : i32, i32
  }
  func.func @transform_4(%arg0: i32, %arg1: i32) -> (i32, i32) {
    %c0_i32 = arith.constant 0 : i32
    %c0_i32_0 = arith.constant 0 : i32
    return %c0_i32, %arg1 : i32, i32
  }
  func.func @transform_5(%arg0: i32, %arg1: i32) -> (i32, i32) {
    %c0_i32 = arith.constant 0 : i32
    %c0_i32_0 = arith.constant 0 : i32
    return %arg1, %c0_i32 : i32, i32
  }
  func.func @transform_6(%arg0: i32, %arg1: i32) -> (i32, i32) {
    %c0_i32 = arith.constant 0 : i32
    %c0_i32_0 = arith.constant 0 : i32
    %c0_i32_1 = arith.constant 0 : i32
    return %c0_i32, %c0_i32_0 : i32, i32
  }
  func.func @transform_7(%arg0: i32, %arg1: i32) -> (i32, i32) {
    %c0_i32 = arith.constant 0 : i32
    %c0_i32_0 = arith.constant 0 : i32
    return %arg0, %c0_i32 : i32, i32
  }
}

module attributes {stable_mosaic.version = 11 : i64} {
  func.func @_lnf_lm_head_kernel(%arg0: i32, %arg1: i32, %arg2: memref<16x32xf32, #tpu.memory_space<vmem>>, %arg3: memref<1x32xf32, #tpu.memory_space<vmem>>, %arg4: memref<1x32xf32, #tpu.memory_space<vmem>>, %arg5: memref<64x32xbf16, #tpu.memory_space<vmem>>, %arg6: memref<16x64xf32, #tpu.memory_space<vmem>>, %arg7: memref<16x32xbf16, #tpu.memory_space<vmem>>) attributes {dimension_semantics = [#tpu.dimension_semantics<parallel>, #tpu.dimension_semantics<arbitrary>], iteration_bounds = array<i64: 1, 1>, scalar_prefetch = 0 : i64, scratch_operands = 1 : i64, tpu.core_type = #tpu.core_type<tc>, window_params = [{transform_indices = @transform_0, window_bounds = array<i64: 16, 32>}, {pipeline_mode = #tpu.pipeline_mode<synchronous>, transform_indices = @transform_1, window_bounds = array<i64: 1, 32>}, {pipeline_mode = #tpu.pipeline_mode<synchronous>, transform_indices = @transform_2, window_bounds = array<i64: 1, 32>}, {transform_indices = @transform_3, window_bounds = array<i64: 64, 32>}, {transform_indices = @transform_4, window_bounds = array<i64: 16, 64>}]} {
    %c0_i32 = arith.constant 0 : i32
    %0 = arith.cmpi eq, %arg1, %c0_i32 : i32
    %1 = arith.extui %0 : i1 to i32
    %c0_i32_0 = arith.constant 0 : i32
    %2 = arith.cmpi ne, %1, %c0_i32_0 : i32
    scf.if %2 {
      %c0_6 = arith.constant 0 : index
      %c0_7 = arith.constant 0 : index
      %7 = vector.load %arg2[%c0_6, %c0_7] : memref<16x32xf32, #tpu.memory_space<vmem>>, vector<16x32xf32>
      %c0_8 = arith.constant 0 : index
      %c0_9 = arith.constant 0 : index
      %8 = vector.load %arg3[%c0_8, %c0_9] : memref<1x32xf32, #tpu.memory_space<vmem>>, vector<1x32xf32>
      %c0_10 = arith.constant 0 : index
      %c0_11 = arith.constant 0 : index
      %9 = vector.load %arg4[%c0_10, %c0_11] : memref<1x32xf32, #tpu.memory_space<vmem>>, vector<1x32xf32>
      %cst_12 = arith.constant dense<0.000000e+00> : vector<16xf32>
      %10 = vector.multi_reduction <add>, %7, %cst_12 [1] : vector<16x32xf32> to vector<16xf32>
      %11 = vector.shape_cast %10 : vector<16xf32> to vector<16x1xf32>
      %cst_13 = arith.constant 3.200000e+01 : f32
      %12 = vector.broadcast %cst_13 : f32 to vector<16x1xf32>
      %13 = arith.divf %11, %12 : vector<16x1xf32>
      %14 = vector.broadcast %13 : vector<16x1xf32> to vector<16x32xf32>
      %15 = arith.subf %7, %14 : vector<16x32xf32>
      %16 = arith.mulf %15, %15 : vector<16x32xf32>
      %cst_14 = arith.constant dense<0.000000e+00> : vector<16xf32>
      %17 = vector.multi_reduction <add>, %16, %cst_14 [1] : vector<16x32xf32> to vector<16xf32>
      %18 = vector.shape_cast %17 : vector<16xf32> to vector<16x1xf32>
      %cst_15 = arith.constant 3.200000e+01 : f32
      %19 = vector.broadcast %cst_15 : f32 to vector<16x1xf32>
      %20 = arith.divf %18, %19 : vector<16x1xf32>
      %cst_16 = arith.constant 9.99999974E-6 : f32
      %21 = vector.broadcast %cst_16 : f32 to vector<16x1xf32>
      %22 = arith.addf %20, %21 : vector<16x1xf32>
      %23 = math.rsqrt %22 : vector<16x1xf32>
      %24 = vector.broadcast %23 : vector<16x1xf32> to vector<16x32xf32>
      %25 = arith.mulf %15, %24 : vector<16x32xf32>
      %26 = vector.broadcast %8 : vector<1x32xf32> to vector<16x32xf32>
      %27 = arith.mulf %25, %26 : vector<16x32xf32>
      %28 = vector.broadcast %9 : vector<1x32xf32> to vector<16x32xf32>
      %29 = arith.addf %27, %28 : vector<16x32xf32>
      %30 = arith.truncf %29 : vector<16x32xf32> to vector<16x32xbf16>
      %c0_17 = arith.constant 0 : index
      %c0_18 = arith.constant 0 : index
      %31 = vector.load %arg7[%c0_17, %c0_18] : memref<16x32xbf16, #tpu.memory_space<vmem>>, vector<16x32xbf16>
      tpu.vector_store %arg7[%c0_17, %c0_18], %30 {strides = array<i32>} : memref<16x32xbf16, #tpu.memory_space<vmem>>, vector<16x32xbf16>,
    } else {
    }
    %c0 = arith.constant 0 : index
    %c0_1 = arith.constant 0 : index
    %3 = vector.load %arg7[%c0, %c0_1] : memref<16x32xbf16, #tpu.memory_space<vmem>>, vector<16x32xbf16>
    %c0_2 = arith.constant 0 : index
    %c0_3 = arith.constant 0 : index
    %4 = vector.load %arg5[%c0_2, %c0_3] : memref<64x32xbf16, #tpu.memory_space<vmem>>, vector<64x32xbf16>
    %cst = arith.constant dense<0.000000e+00> : vector<16x64xf32>
    %5 = tpu.matmul %3, %4, %cst {dimension_numbers = #tpu.dot_dimension_numbers<[1], [1], [0], [0], [0, 0, 1, 0], [], []>} : vector<16x32xbf16>, vector<64x32xbf16>, vector<16x64xf32> -> vector<16x64xf32>
    %c0_4 = arith.constant 0 : index
    %c0_5 = arith.constant 0 : index
    %6 = vector.load %arg6[%c0_4, %c0_5] : memref<16x64xf32, #tpu.memory_space<vmem>>, vector<16x64xf32>
    tpu.vector_store %arg6[%c0_4, %c0_5], %5 {strides = array<i32>} : memref<16x64xf32, #tpu.memory_space<vmem>>, vector<16x64xf32>,
    return
  }
  func.func @transform_0(%arg0: i32, %arg1: i32) -> (i32, i32) {
    %c0_i32 = arith.constant 0 : i32
    %c0_i32_0 = arith.constant 0 : i32
    return %arg0, %c0_i32 : i32, i32
  }
  func.func @transform_1(%arg0: i32, %arg1: i32) -> (i32, i32) {
    %c0_i32 = arith.constant 0 : i32
    %c0_i32_0 = arith.constant 0 : i32
    %c0_i32_1 = arith.constant 0 : i32
    return %c0_i32, %c0_i32_0 : i32, i32
  }
  func.func @transform_2(%arg0: i32, %arg1: i32) -> (i32, i32) {
    %c0_i32 = arith.constant 0 : i32
    %c0_i32_0 = arith.constant 0 : i32
    %c0_i32_1 = arith.constant 0 : i32
    return %c0_i32, %c0_i32_0 : i32, i32
  }
  func.func @transform_3(%arg0: i32, %arg1: i32) -> (i32, i32) {
    %c0_i32 = arith.constant 0 : i32
    %c0_i32_0 = arith.constant 0 : i32
    return %arg1, %c0_i32 : i32, i32
  }
  func.func @transform_4(%arg0: i32, %arg1: i32) -> (i32, i32) {
    %c0_i32 = arith.constant 0 : i32
    return %arg0, %arg1 : i32, i32
  }
}

</mosaic_0001>

<llo_original>
// kernel: _lambda_.9
$region0: #{_lambda_.9}
  #allocation0 [shape = 'u32[]', space=smem, size = 0x4, offset = 0x4, fixed_abs, tag = 'smem constant byte address 0x4 - core index']
  #allocation1 [shape = 'u32[72,128]{1,0:T(1,128)}', space=vmem, size = 0x9000, scoped, tag = 'internal scratch']
  #allocation2 [shape = 'bf16[16,32]{1,0:T(8,128)(2,1)}', space=vmem, size = 0x1000, scoped, tag = 'scratch operand']
  %s0 = inlined_call_operand.vmem [shape: f32[16,32], index: 0, kind: input, shape index: {}]
  %s1 = inlined_call_operand.vmem [shape: f32[1,32], index: 1, kind: input, shape index: {}]
  %s2 = inlined_call_operand.vmem [shape: f32[1,32], index: 2, kind: input, shape index: {}]
  %s3 = inlined_call_operand.vmem [shape: bf16[32,96], index: 3, kind: input, shape index: {}]
  %s4 = inlined_call_operand.vmem [shape: f32[1,96], index: 4, kind: input, shape index: {}]
  %s5 = inlined_call_operand.vmem [shape: bf16[16,96], index: 5, kind: output, shape index: {}]
  %s6 = sld [smem:[#allocation0]]
  $region34: #{_lambda_.9} parent=0
    _
  %s8 = ssub.s32 1, %s6
  %s9 = scalar_select 0, %s8, %s6
  // Predicated region
  $region2: #{_lambda_.9} parent=0 // pred_check
    _
  $region3: #{_lambda_.9} parent=0 // pred_check_branch
    %11 = sbr.rel (0) target = $region5
  $region4: #{_lambda_.9} parent=0 // pred_region
    _
  $region5: #{_lambda_.9} parent=0 // pred_fallthru
    _
  // Predicated region
  $region6: #{_lambda_.9} parent=0 // pred_check
    _
  $region7: #{_lambda_.9} parent=0 // pred_check_branch
    %13 = sbr.rel (0) target = $region9
  $region8: #{_lambda_.9} parent=0 // pred_region
    _
  $region9: #{_lambda_.9} parent=0 // pred_fallthru
    _
  // Predicated region
  $region10: #{_lambda_.9} parent=0 // pred_check
    _
  $region11: #{_lambda_.9} parent=0 // pred_check_branch
    %15 = sbr.rel (0) target = $region13
  $region12: #{_lambda_.9} parent=0 // pred_region
    _
  $region13: #{_lambda_.9} parent=0 // pred_fallthru
    _
  // Predicated region
  $region14: #{_lambda_.9} parent=0 // pred_check
    _
  $region15: #{_lambda_.9} parent=0 // pred_check_branch
    %17 = sbr.rel (0) target = $region17
  $region16: #{_lambda_.9} parent=0 // pred_region
    _
  $region17: #{_lambda_.9} parent=0 // pred_fallthru
    _
  // Predicated region
  $region18: #{_lambda_.9} parent=0 // pred_check
    _
  $region19: #{_lambda_.9} parent=0 // pred_check_branch
    %19 = sbr.rel (0) target = $region21
  $region20: #{_lambda_.9} parent=0 // pred_region
    _
  $region21: #{_lambda_.9} parent=0 // pred_fallthru
    _
  %p21 = scmp.eq.s32.totalorder 0, 0
  // Predicated region
  $region22: #{_lambda_.9} parent=0 // pred_check
    %p22 = pneg %p21
  $region23: #{_lambda_.9} parent=0 // pred_check_branch
    %24 = sbr.rel (%p22) target = $region25
  $region24: #{_lambda_.9} parent=0 // pred_region
    %v25 = vld [vmem:[%s0] sm:$0xff]
    %v26 = vld [vmem:[%s0 + $0x8] sm:$0xff]
    %v27 = vld [vmem:[%s1] sm:$0x1]
    %v28 = vld [vmem:[%s2] sm:$0x1]
    %vm29 = vcmask 261120
    %v30 = vsel %vm29, %v25, 0.0
    %31 = vadd.xlane.f32.xlu0 %v30
    %v32 = vpop.xlane.xlu0 %31
    %v33 = vsel %vm29, %v26, 0.0
    %34 = vadd.xlane.f32.xlu0 %v33
    %v35 = vpop.xlane.xlu0 %34
    %v36 = vrcp.pop 32.0
    %v37 = vmul.f32 32.0, %v36
    %v38 = vsub.f32 1.0, %v37
    %v39 = vmul.f32 %v36, %v38
    %v40 = vadd.f32 %v36, %v39
    %vm41 = vweird.f32 %v36
    %v42 = vsel %vm41, %v36, %v40
    %v43 = vmul.f32 %v32, %v42
    %v44 = vmul.f32 %v35, %v42
    %v45 = vsub.f32 %v25, %v43
    %v46 = vsub.f32 %v26, %v44
    %v47 = vmul.f32 %v45, %v45
    %v48 = vmul.f32 %v46, %v46
    %v49 = vsel %vm29, %v47, 0.0
    %50 = vadd.xlane.f32.xlu0 %v49
    %v51 = vpop.xlane.xlu0 %50
    %v52 = vsel %vm29, %v48, 0.0
    %53 = vadd.xlane.f32.xlu0 %v52
    %v54 = vpop.xlane.xlu0 %53
    %v55 = vmul.f32 %v51, %v42
    %v56 = vmul.f32 %v54, %v42
    %v57 = vadd.f32 %v55, 1e-05
    %v58 = vadd.f32 %v56, 1e-05
    %v59 = vrsqrt.pop %v57
    %v60 = vmul.f32 %v59, %v57
    %v61 = vmul.f32 %v60, %v59
    %v62 = vmul.f32 0.5, %v61
    %v63 = vsub.f32 1.5, %v62
    %v64 = vmul.f32 %v59, %v63
    %vm65 = vweird.f32 %v57
    %vm66 = vweird.f32 %v59
    %vm67 = vmor %vm65, %vm66
    %v68 = vsel %vm67, %v59, %v64
    %v69 = vrsqrt.pop %v58
    %v70 = vmul.f32 %v69, %v58
    %v71 = vmul.f32 %v70, %v69
    %v72 = vmul.f32 0.5, %v71
    %v73 = vsub.f32 1.5, %v72
    %v74 = vmul.f32 %v69, %v73
    %vm75 = vweird.f32 %v58
    %vm76 = vweird.f32 %v69
    %vm77 = vmor %vm75, %vm76
    %v78 = vsel %vm77, %v69, %v74
    %v79 = vmul.f32 %v45, %v68
    %v80 = vmul.f32 %v46, %v78
    %v82 = vperm.slane %v27, 0
    %v84 = vmul.f32 %v79, %v82
    %v85 = vmul.f32 %v80, %v82
    %v87 = vperm.slane %v28, 0
    %v89 = vadd.f32 %v84, %v87
    %v90 = vadd.f32 %v85, %v87
    %v91 = vpack.c.bf16 %v89, %v89
    %v92 = vpack.c.bf16 %v90, %v90
    %vm93 = vcmask 257024
    %94 = vst.msk [vmem:[#allocation2] sm:$0xf] %vm93, %v91
    %95 = vst.msk [vmem:[#allocation2 + $0x4] sm:$0xf] %vm93, %v92
  $region25: #{_lambda_.9} parent=0 // pred_fallthru
    _
  %v96 = vld [vmem:[#allocation2] sm:$0xf]
  %v97 = vld [vmem:[#allocation2 + $0x4] sm:$0xf]
  %v98 = vld [vmem:[%s3] sm:$0xf]
  %v99 = vld [vmem:[%s3 + $0x4] sm:$0xf]
  %v100 = vld [vmem:[%s3 + $0x8] sm:$0xf]
  %v101 = vld [vmem:[%s3 + $0xc] sm:$0xf]
  %v102 = vld [vmem:[%s4] sm:$0x1]
  %v104 = vperm.slane %v102, 0
  %v108 = vunpack.c.l.b16 %v96
  %v109 = vunpack.c.l.b16 %v97
  %v110 = vpack.c.b16 %v109, %v108
  %v115 = vunpack.c.l.b16 %v98
  %v116 = vunpack.c.l.b16 %v99
  %v117 = vunpack.c.l.b16 %v100
  %v118 = vunpack.c.l.b16 %v101
  %v119 = vpack.c.b16 %v116, %v115
  %v120 = vpack.c.b16 %v118, %v117
  %vm123 = vcmask 261120
  %v125 = vsel %vm123, %v110, 0
  %127 = vmatpush.bf16.msra.mxu0 0
  %128 = vmatpush.bf16.msra.mxu0 0
  %129 = vmatpush.bf16.msra.mxu0 0
  %130 = vmatpush.bf16.msra.mxu0 0
  %131 = vmatpush.bf16.msra.mxu0 0
  %132 = vmatpush.bf16.msra.mxu0 0
  %133 = vmatpush.bf16.msra.mxu0 %v120
  %134 = vmatpush.bf16.msra.mxu0 %v119
  %135 = vmatmul.bf16.gmra.mxu0 %v125
  %v136 = vpop.f32.mrf.mxu0
  %v137 = vadd.f32 %v104, %v136
  %v138 = vpop.f32.mrf.mxu0
  %v139 = vadd.f32 %v104, %v138
  %140 = vdwg.mxu0
  %v141 = vpack.c.bf16 %v137, %v137
  %v142 = vpack.c.bf16 %v139, %v139
  %vm143 = vcmask 781312
  %144 = vst.msk [vmem:[%s5] sm:$0xf] %vm143, %v141
  %145 = vst.msk [vmem:[%s5 + $0x4] sm:$0xf] %vm143, %v142
  // Predicated region
  $region26: #{_lambda_.9} parent=0 // pred_check
    _
  $region27: #{_lambda_.9} parent=0 // pred_check_branch
    %147 = sbr.rel (0) target = $region29
  $region28: #{_lambda_.9} parent=0 // pred_region
    _
  $region29: #{_lambda_.9} parent=0 // pred_fallthru
    _
  // Predicated region
  $region30: #{_lambda_.9} parent=0 // pred_check
    _
  $region31: #{_lambda_.9} parent=0 // pred_check_branch
    %149 = sbr.rel (0) target = $region33
  $region32: #{_lambda_.9} parent=0 // pred_region
    _
  $region33: #{_lambda_.9} parent=0 // pred_fallthru
    _

// kernel: _lambda_.11
$region0: #{_lambda_.11}
  #allocation0 [shape = 'u32[]', space=smem, size = 0x4, offset = 0x4, fixed_abs, tag = 'smem constant byte address 0x4 - core index']
  #allocation1 [shape = 'u32[72,128]{1,0:T(1,128)}', space=vmem, size = 0x9000, scoped, tag = 'internal scratch']
  %s0 = inlined_call_operand.vmem [shape: bf16[16,32], index: 0, kind: input, shape index: {}]
  %s1 = inlined_call_operand.vmem [shape: f32[16,32], index: 1, kind: input, shape index: {}]
  %s2 = inlined_call_operand.vmem [shape: bf16[32,32], index: 2, kind: input, shape index: {}]
  %s3 = inlined_call_operand.vmem [shape: f32[1,32], index: 3, kind: input, shape index: {}]
  %s4 = inlined_call_operand.vmem [shape: f32[16,32], index: 4, kind: output, shape index: {}]
  %s5 = sld [smem:[#allocation0]]
  $region26: #{_lambda_.11} parent=0
    _
  %s7 = ssub.s32 1, %s5
  %s8 = scalar_select 0, %s7, %s5
  // Predicated region
  $region2: #{_lambda_.11} parent=0 // pred_check
    _
  $region3: #{_lambda_.11} parent=0 // pred_check_branch
    %10 = sbr.rel (0) target = $region5
  $region4: #{_lambda_.11} parent=0 // pred_region
    _
  $region5: #{_lambda_.11} parent=0 // pred_fallthru
    _
  // Predicated region
  $region6: #{_lambda_.11} parent=0 // pred_check
    _
  $region7: #{_lambda_.11} parent=0 // pred_check_branch
    %12 = sbr.rel (0) target = $region9
  $region8: #{_lambda_.11} parent=0 // pred_region
    _
  $region9: #{_lambda_.11} parent=0 // pred_fallthru
    _
  // Predicated region
  $region10: #{_lambda_.11} parent=0 // pred_check
    _
  $region11: #{_lambda_.11} parent=0 // pred_check_branch
    %14 = sbr.rel (0) target = $region13
  $region12: #{_lambda_.11} parent=0 // pred_region
    _
  $region13: #{_lambda_.11} parent=0 // pred_fallthru
    _
  // Predicated region
  $region14: #{_lambda_.11} parent=0 // pred_check
    _
  $region15: #{_lambda_.11} parent=0 // pred_check_branch
    %16 = sbr.rel (0) target = $region17
  $region16: #{_lambda_.11} parent=0 // pred_region
    _
  $region17: #{_lambda_.11} parent=0 // pred_fallthru
    _
  %v18 = vld [vmem:[%s1] sm:$0xff]
  %v19 = vld [vmem:[%s1 + $0x8] sm:$0xff]
  %v20 = vld [vmem:[%s3] sm:$0x1]
  %v22 = vperm.slane %v20, 0
  %v24 = vadd.f32 %v18, %v22
  %v25 = vadd.f32 %v19, %v22
  %v26 = vld [vmem:[%s0] sm:$0xf]
  %v27 = vld [vmem:[%s0 + $0x4] sm:$0xf]
  %v28 = vld [vmem:[%s2] sm:$0xf]
  %v29 = vld [vmem:[%s2 + $0x4] sm:$0xf]
  %v30 = vld [vmem:[%s2 + $0x8] sm:$0xf]
  %v31 = vld [vmem:[%s2 + $0xc] sm:$0xf]
  %v34 = vunpack.c.l.b16 %v26
  %v35 = vunpack.c.l.b16 %v27
  %v36 = vpack.c.b16 %v35, %v34
  %v41 = vunpack.c.l.b16 %v28
  %v42 = vunpack.c.l.b16 %v29
  %v43 = vunpack.c.l.b16 %v30
  %v44 = vunpack.c.l.b16 %v31
  %v45 = vpack.c.b16 %v42, %v41
  %v46 = vpack.c.b16 %v44, %v43
  %vm49 = vcmask 261120
  %v51 = vsel %vm49, %v36, 0
  %53 = vmatpush.bf16.msra.mxu0 0
  %54 = vmatpush.bf16.msra.mxu0 0
  %55 = vmatpush.bf16.msra.mxu0 0
  %56 = vmatpush.bf16.msra.mxu0 0
  %57 = vmatpush.bf16.msra.mxu0 0
  %58 = vmatpush.bf16.msra.mxu0 0
  %59 = vmatpush.bf16.msra.mxu0 %v46
  %60 = vmatpush.bf16.msra.mxu0 %v45
  %61 = vmatmul.bf16.gmra.mxu0 %v51
  %v62 = vpop.f32.mrf.mxu0
  %v63 = vadd.f32 0.0, %v62
  %v64 = vpop.f32.mrf.mxu0
  %v65 = vadd.f32 0.0, %v64
  %66 = vdwg.mxu0
  %v67 = vadd.f32 %v24, %v63
  %v68 = vadd.f32 %v25, %v65
  %69 = vst.msk [vmem:[%s4] sm:$0xff] %vm49, %v67
  %70 = vst.msk [vmem:[%s4 + $0x8] sm:$0xff] %vm49, %v68
  // Predicated region
  $region18: #{_lambda_.11} parent=0 // pred_check
    _
  $region19: #{_lambda_.11} parent=0 // pred_check_branch
    %72 = sbr.rel (0) target = $region21
  $region20: #{_lambda_.11} parent=0 // pred_region
    _
  $region21: #{_lambda_.11} parent=0 // pred_fallthru
    _
  // Predicated region
  $region22: #{_lambda_.11} parent=0 // pred_check
    _
  $region23: #{_lambda_.11} parent=0 // pred_check_branch
    %74 = sbr.rel (0) target = $region25
  $region24: #{_lambda_.11} parent=0 // pred_region
    _
  $region25: #{_lambda_.11} parent=0 // pred_fallthru
    _

// kernel: _lambda_.10
$region0: #{_lambda_.10}
  #allocation0 [shape = 'u32[]', space=smem, size = 0x4, offset = 0x4, fixed_abs, tag = 'smem constant byte address 0x4 - core index']
  #allocation1 [shape = 'u32[72,128]{1,0:T(1,128)}', space=vmem, size = 0x9000, scoped, tag = 'internal scratch']
  %s0 = inlined_call_operand.vmem [shape: bf16[2,8,96], index: 0, kind: input, shape index: {}]
  %s1 = inlined_call_operand.vmem [shape: bf16[2,8,32], index: 1, kind: output, shape index: {}]
  %s2 = sld [smem:[#allocation0]]
  $region37: #{_lambda_.10} parent=0
    _
  %s4 = ssub.s32 1, %s2
  %s5 = scalar_select 0, %s4, %s2
  loop: start=0, step=1, limit=4
  $region2: #{_lambda_.10} parent=0 // loop_pre_header
    _
  $region3: #{_lambda_.10} parent=0 // loop_header
    %s7 = sphi 0, %s11
    %p8 = scmp.ge.s32.totalorder %s7, 4
    %s17 = sphi 0, %s19
    %s20 = sphi 0, %s17
    %s21 = sphi 0, %s20
    %s37 = sphi 0, %s21
    %s43 = sphi 0, %s45
    %s46 = sphi 0, %s43
    %s47 = sphi 0, %s46
    %s63 = sphi 0, %s47
  $region4: #{_lambda_.10} parent=0 // loop_header_branch
    %10 = sbr.rel (%p8) target = $region8
  $region5: #{_lambda_.10} parent=0 // loop_body
    %s12 = ssub.s32 %s7, 1
    %s13 = ssub.s32 %s7, 2
    %s14 = sadd.s32 %s7, 1
    %s15 = ssub.s32 %s7, %s14
    %p16 = scmp.eq.s32.totalorder %s15, 0
    %s18 = sadd.s32 %s17, 1
    %s19 = scalar_select %p16, %s17, %s18
    %p22 = pneg %p16
    %p23 = scmp.eq.s32.totalorder %s7, 1
    %p24 = por %p22, %p23
    %p25 = scmp.ne.s32.totalorder %s17, %s20
    %p26 = scmp.eq.s32.totalorder %s7, 0
    %p27 = por %p25, %p26
    %p28 = scmp.ne.s32.totalorder %s17, %s20
    %p29 = scmp.eq.s32.totalorder %s12, 1
    %p30 = por %p28, %p29
    %p31 = scmp.ne.s32.totalorder %s20, %s21
    %p32 = scmp.eq.s32.totalorder %s12, 0
    %p33 = por %p31, %p32
    %p34 = scmp.ne.s32.totalorder %s20, %s21
    %p35 = scmp.eq.s32.totalorder %s13, 1
    %p36 = por %p34, %p35
    %p38 = scmp.ne.s32.totalorder %s21, %s37
    %p39 = scmp.eq.s32.totalorder %s13, 0
    %p40 = por %p38, %p39
    %s41 = ssub.s32 %s7, %s14
    %p42 = scmp.eq.s32.totalorder %s41, 0
    %s44 = sadd.s32 %s43, 1
    %s45 = scalar_select %p42, %s43, %s44
    %p48 = pneg %p42
    %p49 = scmp.eq.s32.totalorder %s7, 1
    %p50 = por %p48, %p49
    %p51 = scmp.ne.s32.totalorder %s43, %s46
    %p52 = scmp.eq.s32.totalorder %s7, 0
    %p53 = por %p51, %p52
    %p54 = scmp.ne.s32.totalorder %s43, %s46
    %p55 = scmp.eq.s32.totalorder %s12, 1
    %p56 = por %p54, %p55
    %p57 = scmp.ne.s32.totalorder %s46, %s47
    %p58 = scmp.eq.s32.totalorder %s12, 0
    %p59 = por %p57, %p58
    %p60 = scmp.ne.s32.totalorder %s46, %s47
    %p61 = scmp.eq.s32.totalorder %s13, 1
    %p62 = por %p60, %p61
    %p64 = scmp.ne.s32.totalorder %s47, %s63
    %p65 = scmp.eq.s32.totalorder %s13, 0
    %p66 = por %p64, %p65
    %p67 = scmp.le.s32.totalorder 1, %s7
    %p68 = scmp.lt.s32.totalorder %s7, 3
    %p69 = pnand %p67, %p68
    %p70 = pneg %p69
    // Predicated region
    $region9: #{_lambda_.10} parent=5 // pred_check
      _
    $region10: #{_lambda_.10} parent=5 // pred_check_branch
      %72 = sbr.rel (%p69) target = $region12
    $region11: #{_lambda_.10} parent=5 // pred_region
      %s73 = ssub.s32 %s7, 1
    $region12: #{_lambda_.10} parent=5 // pred_fallthru
      _
    %p74 = scmp.lt.s32.totalorder %s7, 2
    // Predicated region
    $region13: #{_lambda_.10} parent=5 // pred_check
      %p75 = pneg %p74
    $region14: #{_lambda_.10} parent=5 // pred_check_branch
      %77 = sbr.rel (%p75) target = $region16
    $region15: #{_lambda_.10} parent=5 // pred_region
      // Predicated region
      $region17: #{_lambda_.10} parent=15 // pred_check
        %p78 = pneg %p27
      $region18: #{_lambda_.10} parent=15 // pred_check_branch
        %80 = sbr.rel (%p78) target = $region20
      $region19: #{_lambda_.10} parent=15 // pred_region
        %p81 = scmp.lt.s32.totalorder %s7, 1
        %s82 = scalar_select %p81, %s7, 1
        %s83 = smul.addr %s82, 4
        %s84 = scalar_lea.vmem %s0, %s83
      $region20: #{_lambda_.10} parent=15 // pred_fallthru
        _
    $region16: #{_lambda_.10} parent=5 // pred_fallthru
      _
    %p85 = scmp.le.s32.totalorder 1, %s7
    %p86 = scmp.lt.s32.totalorder %s7, 3
    %p87 = pnand %p85, %p86
    %p88 = pneg %p87
    // Predicated region
    $region21: #{_lambda_.10} parent=5 // pred_check
      _
    $region22: #{_lambda_.10} parent=5 // pred_check_branch
      %90 = sbr.rel (%p87) target = $region24
    $region23: #{_lambda_.10} parent=5 // pred_region
      %s91 = ssub.s32 %s7, 1
      %p92 = scmp.lt.s32.totalorder %s12, 1
      %s93 = scalar_select %p92, %s12, 1
      %s94 = smul.addr %s93, 4
      %s95 = scalar_lea.vmem %s0, %s94
      %p96 = pneg %p33
      %p97 = pneg %p30
      %p98 = pneg %p59
      %p99 = pneg %p56
      %p100 = scmp.lt.s32.totalorder %s12, 1
      %s101 = scalar_select %p100, %s12, 1
      %s102 = smul.addr %s101, 4
      %s103 = scalar_lea.vmem %s1, %s102
      %p104 = scmp.lt.s32.totalorder %s12, 1
      %s105 = scalar_select %p104, %s12, 1
      %s106 = smul.addr %s105, 4
      %s107 = scalar_lea.vmem %s0, %s106
      %p108 = scmp.lt.s32.totalorder %s12, 1
      %s109 = scalar_select %p108, %s12, 1
      %s110 = smul.addr %s109, 4
      %s111 = scalar_lea.vmem %s1, %s110
      %v113 = vld [vmem:[%s107] sm:$0xf]
      %v114 = vlaneseq
      %v115 = vshrl.u32 %v114, 7
      %v116 = vlaneseq
      %v117 = vand.u32 %v116, 127
      %vm118 = vcmp.le.s32.totalorder %v117, %v115
      %v120 = vunpack.c.l.b16 %v113
      %v121 = vpack.c.b16 %v120, %v120
      %122 = vrot.lane.b32.xlu0 %v121, 96
      %v123 = vpop.permute.xlu0 %122
      %vm124 = vcmask 64512
      %v126 = vsel %vm124, %v113, 0
      %v129 = vsel %vm124, %v123, 0
      %131 = vmatpush.bf16.xpose.msra.mxu0 0
      %132 = vmatpush.bf16.xpose.msra.mxu0 0
      %133 = vmatpush.bf16.xpose.msra.mxu0 0
      %134 = vmatpush.bf16.xpose.msra.mxu0 0
      %135 = vmatpush.bf16.xpose.msra.mxu0 0
      %136 = vmatpush.bf16.xpose.msra.mxu0 0
      %137 = vmatpush.bf16.xpose.msra.mxu0 0
      %138 = vmatpush.bf16.xpose.msra.mxu0 %v129
      %139 = vmatmul.bf16.gmra.mxu0 %v126
      %v140 = vpop.f32.mrf.mxu0
      %v141 = vadd.f32 0.0, %v140
      %v142 = vpop.f32.mrf.mxu0
      %143 = vdwg.mxu0
      %v144 = vsel %vm118, %v141, -inf
      %v145 = vsel %vm124, %v144, -inf
      %146 = vmax.xlane.f32.xlu0 %v145
      %v147 = vpop.xlane.xlu0 %146
      %v148 = vsub.f32 %v144, %v147
      %v149 = vmul.f32 %v148, 1.442695
      %v150 = vpow.pop %v149
      %v151 = vsel %vm124, %v150, 0.0
      %152 = vadd.xlane.f32.xlu0 %v151
      %v153 = vpop.xlane.xlu0 %152
      %v154 = vrcp.pop %v153
      %v155 = vmul.f32 %v150, %v154
      %v156 = vpack.c.bf16 %v155, %v155
      %157 = vrot.lane.b32.xlu0 %v121, 64
      %v158 = vpop.permute.xlu0 %157
      %v160 = vsel %vm124, %v156, 0
      %vm162 = vcmask 1043456
      %v164 = vsel %vm162, %v158, 0
      %166 = vmatpush.bf16.msra.mxu0 0
      %167 = vmatpush.bf16.msra.mxu0 0
      %168 = vmatpush.bf16.msra.mxu0 0
      %169 = vmatpush.bf16.msra.mxu0 0
      %170 = vmatpush.bf16.msra.mxu0 0
      %171 = vmatpush.bf16.msra.mxu0 0
      %172 = vmatpush.bf16.msra.mxu0 0
      %173 = vmatpush.bf16.msra.mxu0 %v164
      %174 = vmatmul.bf16.gmra.mxu0 %v160
      %v175 = vpop.f32.mrf.mxu0
      %v176 = vadd.f32 0.0, %v175
      %v177 = vpop.f32.mrf.mxu0
      %178 = vdwg.mxu0
      %179 = vrot.lane.b32.xlu0 %v121, 120
      %v180 = vpop.permute.xlu0 %179
      %181 = vrot.lane.b32.xlu0 %v121, 88
      %v182 = vpop.permute.xlu0 %181
      %v184 = vsel %vm124, %v180, 0
      %v187 = vsel %vm124, %v182, 0
      %189 = vmatpush.bf16.xpose.msra.mxu0 0
      %190 = vmatpush.bf16.xpose.msra.mxu0 0
      %191 = vmatpush.bf16.xpose.msra.mxu0 0
      %192 = vmatpush.bf16.xpose.msra.mxu0 0
      %193 = vmatpush.bf16.xpose.msra.mxu0 0
      %194 = vmatpush.bf16.xpose.msra.mxu0 0
      %195 = vmatpush.bf16.xpose.msra.mxu0 0
      %196 = vmatpush.bf16.xpose.msra.mxu0 %v187
      %197 = vmatmul.bf16.gmra.mxu0 %v184
      %v198 = vpop.f32.mrf.mxu0
      %v199 = vadd.f32 0.0, %v198
      %v200 = vpop.f32.mrf.mxu0
      %201 = vdwg.mxu0
      %v202 = vsel %vm118, %v199, -inf
      %v203 = vsel %vm124, %v202, -inf
      %204 = vmax.xlane.f32.xlu0 %v203
      %v205 = vpop.xlane.xlu0 %204
      %v206 = vsub.f32 %v202, %v205
      %v207 = vmul.f32 %v206, 1.442695
      %v208 = vpow.pop %v207
      %v209 = vsel %vm124, %v208, 0.0
      %210 = vadd.xlane.f32.xlu0 %v209
      %v211 = vpop.xlane.xlu0 %210
      %v212 = vrcp.pop %v211
      %v213 = vmul.f32 %v208, %v212
      %v214 = vpack.c.bf16 %v213, %v213
      %215 = vrot.lane.b32.xlu0 %v121, 56
      %v216 = vpop.permute.xlu0 %215
      %v218 = vsel %vm124, %v214, 0
      %v221 = vsel %vm162, %v216, 0
      %223 = vmatpush.bf16.msra.mxu0 0
      %224 = vmatpush.bf16.msra.mxu0 0
      %225 = vmatpush.bf16.msra.mxu0 0
      %226 = vmatpush.bf16.msra.mxu0 0
      %227 = vmatpush.bf16.msra.mxu0 0
      %228 = vmatpush.bf16.msra.mxu0 0
      %229 = vmatpush.bf16.msra.mxu0 0
      %230 = vmatpush.bf16.msra.mxu0 %v221
      %231 = vmatmul.bf16.gmra.mxu0 %v218
      %v232 = vpop.f32.mrf.mxu0
      %v233 = vadd.f32 0.0, %v232
      %v234 = vpop.f32.mrf.mxu0
      %235 = vdwg.mxu0
      %236 = vrot.lane.b32.xlu0 %v121, 112
      %v237 = vpop.permute.xlu0 %236
      %238 = vrot.lane.b32.xlu0 %v121, 80
      %v239 = vpop.permute.xlu0 %238
      %v241 = vsel %vm124, %v237, 0
      %v244 = vsel %vm124, %v239, 0
      %246 = vmatpush.bf16.xpose.msra.mxu0 0
      %247 = vmatpush.bf16.xpose.msra.mxu0 0
      %248 = vmatpush.bf16.xpose.msra.mxu0 0
      %249 = vmatpush.bf16.xpose.msra.mxu0 0
      %250 = vmatpush.bf16.xpose.msra.mxu0 0
      %251 = vmatpush.bf16.xpose.msra.mxu0 0
      %252 = vmatpush.bf16.xpose.msra.mxu0 0
      %253 = vmatpush.bf16.xpose.msra.mxu0 %v244
      %254 = vmatmul.bf16.gmra.mxu0 %v241
      %v255 = vpop.f32.mrf.mxu0
      %v256 = vadd.f32 0.0, %v255
      %v257 = vpop.f32.mrf.mxu0
      %258 = vdwg.mxu0
      %v259 = vsel %vm118, %v256, -inf
      %v260 = vsel %vm124, %v259, -inf
      %261 = vmax.xlane.f32.xlu0 %v260
      %v262 = vpop.xlane.xlu0 %261
      %v263 = vsub.f32 %v259, %v262
      %v264 = vmul.f32 %v263, 1.442695
      %v265 = vpow.pop %v264
      %v266 = vsel %vm124, %v265, 0.0
      %267 = vadd.xlane.f32.xlu0 %v266
      %v268 = vpop.xlane.xlu0 %267
      %v269 = vrcp.pop %v268
      %v270 = vmul.f32 %v265, %v269
      %v271 = vpack.c.bf16 %v270, %v270
      %272 = vrot.lane.b32.xlu0 %v121, 48
      %v273 = vpop.permute.xlu0 %272
      %v275 = vsel %vm124, %v271, 0
      %v278 = vsel %vm162, %v273, 0
      %280 = vmatpush.bf16.msra.mxu0 0
      %281 = vmatpush.bf16.msra.mxu0 0
      %282 = vmatpush.bf16.msra.mxu0 0
      %283 = vmatpush.bf16.msra.mxu0 0
      %284 = vmatpush.bf16.msra.mxu0 0
      %285 = vmatpush.bf16.msra.mxu0 0
      %286 = vmatpush.bf16.msra.mxu0 0
      %287 = vmatpush.bf16.msra.mxu0 %v278
      %288 = vmatmul.bf16.gmra.mxu0 %v275
      %v289 = vpop.f32.mrf.mxu0
      %v290 = vadd.f32 0.0, %v289
      %v291 = vpop.f32.mrf.mxu0
      %292 = vdwg.mxu0
      %293 = vrot.lane.b32.xlu0 %v121, 104
      %v294 = vpop.permute.xlu0 %293
      %295 = vrot.lane.b32.xlu0 %v121, 72
      %v296 = vpop.permute.xlu0 %295
      %v298 = vsel %vm124, %v294, 0
      %v301 = vsel %vm124, %v296, 0
      %303 = vmatpush.bf16.xpose.msra.mxu0 0
      %304 = vmatpush.bf16.xpose.msra.mxu0 0
      %305 = vmatpush.bf16.xpose.msra.mxu0 0
      %306 = vmatpush.bf16.xpose.msra.mxu0 0
      %307 = vmatpush.bf16.xpose.msra.mxu0 0
      %308 = vmatpush.bf16.xpose.msra.mxu0 0
      %309 = vmatpush.bf16.xpose.msra.mxu0 0
      %310 = vmatpush.bf16.xpose.msra.mxu0 %v301
      %311 = vmatmul.bf16.gmra.mxu0 %v298
      %v312 = vpop.f32.mrf.mxu0
      %v313 = vadd.f32 0.0, %v312
      %v314 = vpop.f32.mrf.mxu0
      %315 = vdwg.mxu0
      %v316 = vsel %vm118, %v313, -inf
      %v317 = vsel %vm124, %v316, -inf
      %318 = vmax.xlane.f32.xlu0 %v317
      %v319 = vpop.xlane.xlu0 %318
      %v320 = vsub.f32 %v316, %v319
      %v321 = vmul.f32 %v320, 1.442695
      %v322 = vpow.pop %v321
      %v323 = vsel %vm124, %v322, 0.0
      %324 = vadd.xlane.f32.xlu0 %v323
      %v325 = vpop.xlane.xlu0 %324
      %v326 = vrcp.pop %v325
      %v327 = vmul.f32 %v322, %v326
      %v328 = vpack.c.bf16 %v327, %v327
      %329 = vrot.lane.b32.xlu0 %v121, 40
      %v330 = vpop.permute.xlu0 %329
      %v332 = vsel %vm124, %v328, 0
      %v335 = vsel %vm162, %v330, 0
      %337 = vmatpush.bf16.msra.mxu0 0
      %338 = vmatpush.bf16.msra.mxu0 0
      %339 = vmatpush.bf16.msra.mxu0 0
      %340 = vmatpush.bf16.msra.mxu0 0
      %341 = vmatpush.bf16.msra.mxu0 0
      %342 = vmatpush.bf16.msra.mxu0 0
      %343 = vmatpush.bf16.msra.mxu0 0
      %344 = vmatpush.bf16.msra.mxu0 %v335
      %345 = vmatmul.bf16.gmra.mxu0 %v332
      %v346 = vpop.f32.mrf.mxu0
      %v347 = vadd.f32 0.0, %v346
      %v348 = vpop.f32.mrf.mxu0
      %349 = vdwg.mxu0
      %351 = vrot.lane.b32.xlu0 %v233, 8
      %v352 = vpop.permute.xlu0 %351
      %355 = vrot.lane.b32.xlu0 %v290, 16
      %v356 = vpop.permute.xlu0 %355
      %359 = vrot.lane.b32.xlu0 %v347, 24
      %v360 = vpop.permute.xlu0 %359
      %v362 = vsel %vm124, %v176, %v352
      %vm363 = vcmask 130048
      %v364 = vsel %vm363, %v362, %v356
      %vm365 = vcmask 195584
      %v366 = vsel %vm365, %v364, %v360
      %v367 = vpack.c.bf16 %v366, %v366
      %vm368 = vcmask 257024
      %369 = vst.msk [vmem:[%s111] sm:$0xf] %vm368, %v367
      %p370 = scmp.lt.s32.totalorder %s12, 1
      %s371 = scalar_select %p370, %s12, 1
      %s372 = smul.addr %s371, 4
      %s373 = scalar_lea.vmem %s1, %s372
      // Predicated region
      $region25: #{_lambda_.10} parent=23 // pred_check
        %p374 = pneg %p56
      $region26: #{_lambda_.10} parent=23 // pred_check_branch
        %376 = sbr.rel (%p374) target = $region28
      $region27: #{_lambda_.10} parent=23 // pred_region
        _
      $region28: #{_lambda_.10} parent=23 // pred_fallthru
        _
    $region24: #{_lambda_.10} parent=5 // pred_fallthru
      _
    %p377 = scmp.le.s32.totalorder 2, %s7
    // Predicated region
    $region29: #{_lambda_.10} parent=5 // pred_check
      %p378 = pneg %p377
    $region30: #{_lambda_.10} parent=5 // pred_check_branch
      %380 = sbr.rel (%p378) target = $region32
    $region31: #{_lambda_.10} parent=5 // pred_region
      %s381 = ssub.s32 %s7, 2
      // Predicated region
      $region33: #{_lambda_.10} parent=31 // pred_check
        %p382 = pneg %p62
      $region34: #{_lambda_.10} parent=31 // pred_check_branch
        %384 = sbr.rel (%p382) target = $region36
      $region35: #{_lambda_.10} parent=31 // pred_region
        %p385 = scmp.lt.s32.totalorder %s13, 1
        %s386 = scalar_select %p385, %s13, 1
        %s387 = smul.addr %s386, 4
        %s388 = scalar_lea.vmem %s1, %s387
      $region36: #{_lambda_.10} parent=31 // pred_fallthru
        _
    $region32: #{_lambda_.10} parent=5 // pred_fallthru
      _
  $region6: #{_lambda_.10} parent=0 // loop_footer
    %s11 = sadd.s32 1, %s7
  $region7: #{_lambda_.10} parent=0 // loop_footer_branch
    %6 = sbr.rel target = $region3
  $region8: #{_lambda_.10} parent=0 // loop_exit
    _

// kernel: _lambda_.12
$region0: #{_lambda_.12}
  #allocation0 [shape = 'u32[]', space=smem, size = 0x4, offset = 0x4, fixed_abs, tag = 'smem constant byte address 0x4 - core index']
  #allocation1 [shape = 'u32[72,128]{1,0:T(1,128)}', space=vmem, size = 0x9000, scoped, tag = 'internal scratch']
  #allocation2 [shape = 'bf16[16,32]{1,0:T(8,128)(2,1)}', space=vmem, size = 0x1000, scoped, tag = 'scratch operand']
  #allocation3 [shape = 'f32[16,32]{1,0:T(8,128)}', space=vmem, size = 0x2000, scoped, tag = 'scratch operand']
  %s0 = inlined_call_operand.vmem [shape: f32[16,32], index: 0, kind: input, shape index: {}]
  %s1 = inlined_call_operand.vmem [shape: f32[1,32], index: 1, kind: input, shape index: {}]
  %s2 = inlined_call_operand.vmem [shape: f32[1,32], index: 2, kind: input, shape index: {}]
  %s3 = inlined_call_operand.vmem [shape: bf16[32,128], index: 3, kind: input, shape index: {}]
  %s4 = inlined_call_operand.vmem [shape: f32[1,128], index: 4, kind: input, shape index: {}]
  %s5 = inlined_call_operand.vmem [shape: bf16[128,32], index: 5, kind: input, shape index: {}]
  %s6 = inlined_call_operand.vmem [shape: f32[1,32], index: 6, kind: input, shape index: {}]
  %s7 = inlined_call_operand.vmem [shape: f32[16,32], index: 7, kind: output, shape index: {}]
  %s8 = sld [smem:[#allocation0]]
  $region46: #{_lambda_.12} parent=0
    _
  %s10 = ssub.s32 1, %s8
  %s11 = scalar_select 0, %s10, %s8
  // Predicated region
  $region2: #{_lambda_.12} parent=0 // pred_check
    _
  $region3: #{_lambda_.12} parent=0 // pred_check_branch
    %13 = sbr.rel (0) target = $region5
  $region4: #{_lambda_.12} parent=0 // pred_region
    _
  $region5: #{_lambda_.12} parent=0 // pred_fallthru
    _
  // Predicated region
  $region6: #{_lambda_.12} parent=0 // pred_check
    _
  $region7: #{_lambda_.12} parent=0 // pred_check_branch
    %15 = sbr.rel (0) target = $region9
  $region8: #{_lambda_.12} parent=0 // pred_region
    _
  $region9: #{_lambda_.12} parent=0 // pred_fallthru
    _
  // Predicated region
  $region10: #{_lambda_.12} parent=0 // pred_check
    _
  $region11: #{_lambda_.12} parent=0 // pred_check_branch
    %17 = sbr.rel (0) target = $region13
  $region12: #{_lambda_.12} parent=0 // pred_region
    _
  $region13: #{_lambda_.12} parent=0 // pred_fallthru
    _
  // Predicated region
  $region14: #{_lambda_.12} parent=0 // pred_check
    _
  $region15: #{_lambda_.12} parent=0 // pred_check_branch
    %19 = sbr.rel (0) target = $region17
  $region16: #{_lambda_.12} parent=0 // pred_region
    _
  $region17: #{_lambda_.12} parent=0 // pred_fallthru
    _
  // Predicated region
  $region18: #{_lambda_.12} parent=0 // pred_check
    _
  $region19: #{_lambda_.12} parent=0 // pred_check_branch
    %21 = sbr.rel (0) target = $region21
  $region20: #{_lambda_.12} parent=0 // pred_region
    _
  $region21: #{_lambda_.12} parent=0 // pred_fallthru
    _
  // Predicated region
  $region22: #{_lambda_.12} parent=0 // pred_check
    _
  $region23: #{_lambda_.12} parent=0 // pred_check_branch
    %23 = sbr.rel (0) target = $region25
  $region24: #{_lambda_.12} parent=0 // pred_region
    _
  $region25: #{_lambda_.12} parent=0 // pred_fallthru
    _
  // Predicated region
  $region26: #{_lambda_.12} parent=0 // pred_check
    _
  $region27: #{_lambda_.12} parent=0 // pred_check_branch
    %25 = sbr.rel (0) target = $region29
  $region28: #{_lambda_.12} parent=0 // pred_region
    _
  $region29: #{_lambda_.12} parent=0 // pred_fallthru
    _
  %p27 = scmp.eq.s32.totalorder 0, 0
  // Predicated region
  $region30: #{_lambda_.12} parent=0 // pred_check
    %p28 = pneg %p27
  $region31: #{_lambda_.12} parent=0 // pred_check_branch
    %30 = sbr.rel (%p28) target = $region33
  $region32: #{_lambda_.12} parent=0 // pred_region
    %v31 = vld [vmem:[%s0] sm:$0xff]
    %v32 = vld [vmem:[%s0 + $0x8] sm:$0xff]
    %v33 = vld [vmem:[%s6] sm:$0x1]
    %v35 = vperm.slane %v33, 0
    %v37 = vadd.f32 %v31, %v35
    %v38 = vadd.f32 %v32, %v35
    %vm39 = vcmask 261120
    %40 = vst.msk [vmem:[#allocation3] sm:$0xff] %vm39, %v37
    %41 = vst.msk [vmem:[#allocation3 + $0x8] sm:$0xff] %vm39, %v38
    %v42 = vld [vmem:[%s1] sm:$0x1]
    %v43 = vld [vmem:[%s2] sm:$0x1]
    %v44 = vsel %vm39, %v31, 0.0
    %45 = vadd.xlane.f32.xlu0 %v44
    %v46 = vpop.xlane.xlu0 %45
    %v47 = vsel %vm39, %v32, 0.0
    %48 = vadd.xlane.f32.xlu0 %v47
    %v49 = vpop.xlane.xlu0 %48
    %v50 = vrcp.pop 32.0
    %v51 = vmul.f32 32.0, %v50
    %v52 = vsub.f32 1.0, %v51
    %v53 = vmul.f32 %v50, %v52
    %v54 = vadd.f32 %v50, %v53
    %vm55 = vweird.f32 %v50
    %v56 = vsel %vm55, %v50, %v54
    %v57 = vmul.f32 %v46, %v56
    %v58 = vmul.f32 %v49, %v56
    %v59 = vsub.f32 %v31, %v57
    %v60 = vsub.f32 %v32, %v58
    %v61 = vmul.f32 %v59, %v59
    %v62 = vmul.f32 %v60, %v60
    %v63 = vsel %vm39, %v61, 0.0
    %64 = vadd.xlane.f32.xlu0 %v63
    %v65 = vpop.xlane.xlu0 %64
    %v66 = vsel %vm39, %v62, 0.0
    %67 = vadd.xlane.f32.xlu0 %v66
    %v68 = vpop.xlane.xlu0 %67
    %v69 = vmul.f32 %v65, %v56
    %v70 = vmul.f32 %v68, %v56
    %v71 = vadd.f32 %v69, 1e-05
    %v72 = vadd.f32 %v70, 1e-05
    %v73 = vrsqrt.pop %v71
    %v74 = vmul.f32 %v73, %v71
    %v75 = vmul.f32 %v74, %v73
    %v76 = vmul.f32 0.5, %v75
    %v77 = vsub.f32 1.5, %v76
    %v78 = vmul.f32 %v73, %v77
    %vm79 = vweird.f32 %v71
    %vm80 = vweird.f32 %v73
    %vm81 = vmor %vm79, %vm80
    %v82 = vsel %vm81, %v73, %v78
    %v83 = vrsqrt.pop %v72
    %v84 = vmul.f32 %v83, %v72
    %v85 = vmul.f32 %v84, %v83
    %v86 = vmul.f32 0.5, %v85
    %v87 = vsub.f32 1.5, %v86
    %v88 = vmul.f32 %v83, %v87
    %vm89 = vweird.f32 %v72
    %vm90 = vweird.f32 %v83
    %vm91 = vmor %vm89, %vm90
    %v92 = vsel %vm91, %v83, %v88
    %v93 = vmul.f32 %v59, %v82
    %v94 = vmul.f32 %v60, %v92
    %v96 = vperm.slane %v42, 0
    %v98 = vmul.f32 %v93, %v96
    %v99 = vmul.f32 %v94, %v96
    %v101 = vperm.slane %v43, 0
    %v103 = vadd.f32 %v98, %v101
    %v104 = vadd.f32 %v99, %v101
    %v105 = vpack.c.bf16 %v103, %v103
    %v106 = vpack.c.bf16 %v104, %v104
    %vm107 = vcmask 257024
    %108 = vst.msk [vmem:[#allocation2] sm:$0xf] %vm107, %v105
    %109 = vst.msk [vmem:[#allocation2 + $0x4] sm:$0xf] %vm107, %v106
  $region33: #{_lambda_.12} parent=0 // pred_fallthru
    _
  %v110 = vld [vmem:[#allocation2] sm:$0xf]
  %v111 = vld [vmem:[#allocation2 + $0x4] sm:$0xf]
  %v112 = vld [vmem:[%s3] sm:$0xf]
  %v113 = vld [vmem:[%s3 + $0x4] sm:$0xf]
  %v114 = vld [vmem:[%s3 + $0x8] sm:$0xf]
  %v115 = vld [vmem:[%s3 + $0xc] sm:$0xf]
  %v116 = vld [vmem:[%s4] sm:$0x1]
  %v118 = vperm.slane %v116, 0
  %v122 = vunpack.c.l.b16 %v110
  %v123 = vunpack.c.l.b16 %v111
  %v124 = vpack.c.b16 %v123, %v122
  %v129 = vunpack.c.l.b16 %v112
  %v130 = vunpack.c.l.b16 %v113
  %v131 = vunpack.c.l.b16 %v114
  %v132 = vunpack.c.l.b16 %v115
  %v133 = vpack.c.b16 %v130, %v129
  %v134 = vpack.c.b16 %v132, %v131
  %vm137 = vcmask 261120
  %v139 = vsel %vm137, %v124, 0
  %141 = vmatpush.bf16.msra.mxu0 0
  %142 = vmatpush.bf16.msra.mxu0 0
  %143 = vmatpush.bf16.msra.mxu0 0
  %144 = vmatpush.bf16.msra.mxu0 0
  %145 = vmatpush.bf16.msra.mxu0 0
  %146 = vmatpush.bf16.msra.mxu0 0
  %147 = vmatpush.bf16.msra.mxu0 %v134
  %148 = vmatpush.bf16.msra.mxu0 %v133
  %149 = vmatmul.bf16.gmra.mxu0 %v139
  %v150 = vpop.f32.mrf.mxu0
  %v151 = vadd.f32 %v118, %v150
  %v152 = vpop.f32.mrf.mxu0
  %v153 = vadd.f32 %v118, %v152
  %154 = vdwg.mxu0
  %v155 = vmul.f32 %v151, 0.5
  %v156 = vmul.f32 %v153, 0.5
  %v157 = vmul.f32 %v151, 0.70710677
  %v158 = vmul.f32 %v153, 0.70710677
  %v159 = vmul.f32 %v157, %v157
  %v160 = vmin.f32 16.0, %v159
  %v161 = vmul.f32 %v160, 2.1237322e-06
  %v162 = vadd.f32 %v161, 0.00028619796
  %v163 = vmul.f32 %v160, %v162
  %v164 = vadd.f32 %v163, 0.0036580483
  %v165 = vmul.f32 %v160, %v164
  %v166 = vadd.f32 %v165, 0.05243302
  %v167 = vmul.f32 %v160, %v166
  %v168 = vadd.f32 %v167, 0.18741608
  %v169 = vmul.f32 %v160, %v168
  %v170 = vadd.f32 %v169, 1.1283791
  %v171 = vmul.f32 %v157, %v170
  %v172 = vmul.f32 %v160, 3.8918573e-05
  %v173 = vadd.f32 %v172, 0.001143296
  %v174 = vmul.f32 %v160, %v173
  %v175 = vadd.f32 %v174, 0.014752088
  %v176 = vmul.f32 %v160, %v175
  %v177 = vadd.f32 %v176, 0.112945676
  %v178 = vmul.f32 %v160, %v177
  %v179 = vadd.f32 %v178, 0.4994258
  %v180 = vmul.f32 %v160, %v179
  %v181 = vadd.f32 %v180, 1.0
  %v182 = vrcp.pop %v181
  %v183 = vmul.f32 %v181, %v182
  %v184 = vsub.f32 1.0, %v183
  %v185 = vmul.f32 %v182, %v184
  %v186 = vadd.f32 %v182, %v185
  %vm187 = vweird.f32 %v181
  %vm188 = vweird.f32 %v182
  %vm189 = vmor %vm187, %vm188
  %v190 = vsel %vm189, %v182, %v186
  %v191 = vand.u32 2147483647, %v181
  %vm192 = vcmp.eq.f32.partialorder %v191, 8.507059e+37
  %v193 = vand.u32 %v181, 2147483648
  %v194 = vor.u32 1.1754944e-38, %v193
  %v195 = vsel %vm192, %v194, %v190
  %v196 = vmul.f32 %v171, %v195
  %v197 = vmin.f32 %v196, 1.0
  %v198 = vmax.f32 %v197, -1.0
  %v199 = vmul.f32 %v158, %v158
  %v200 = vmin.f32 16.0, %v199
  %v201 = vmul.f32 %v200, 2.1237322e-06
  %v202 = vadd.f32 %v201, 0.00028619796
  %v203 = vmul.f32 %v200, %v202
  %v204 = vadd.f32 %v203, 0.0036580483
  %v205 = vmul.f32 %v200, %v204
  %v206 = vadd.f32 %v205, 0.05243302
  %v207 = vmul.f32 %v200, %v206
  %v208 = vadd.f32 %v207, 0.18741608
  %v209 = vmul.f32 %v200, %v208
  %v210 = vadd.f32 %v209, 1.1283791
  %v211 = vmul.f32 %v158, %v210
  %v212 = vmul.f32 %v200, 3.8918573e-05
  %v213 = vadd.f32 %v212, 0.001143296
  %v214 = vmul.f32 %v200, %v213
  %v215 = vadd.f32 %v214, 0.014752088
  %v216 = vmul.f32 %v200, %v215
  %v217 = vadd.f32 %v216, 0.112945676
  %v218 = vmul.f32 %v200, %v217
  %v219 = vadd.f32 %v218, 0.4994258
  %v220 = vmul.f32 %v200, %v219
  %v221 = vadd.f32 %v220, 1.0
  %v222 = vrcp.pop %v221
  %v223 = vmul.f32 %v221, %v222
  %v224 = vsub.f32 1.0, %v223
  %v225 = vmul.f32 %v222, %v224
  %v226 = vadd.f32 %v222, %v225
  %vm227 = vweird.f32 %v221
  %vm228 = vweird.f32 %v222
  %vm229 = vmor %vm227, %vm228
  %v230 = vsel %vm229, %v222, %v226
  %v231 = vand.u32 2147483647, %v221
  %vm232 = vcmp.eq.f32.partialorder %v231, 8.507059e+37
  %v233 = vand.u32 %v221, 2147483648
  %v234 = vor.u32 1.1754944e-38, %v233
  %v235 = vsel %vm232, %v234, %v230
  %v236 = vmul.f32 %v211, %v235
  %v237 = vmin.f32 %v236, 1.0
  %v238 = vmax.f32 %v237, -1.0
  %v239 = vadd.f32 %v198, 1.0
  %v240 = vadd.f32 %v238, 1.0
  %v241 = vmul.f32 %v155, %v239
  %v242 = vmul.f32 %v156, %v240
  %v243 = vld [vmem:[#allocation3] sm:$0xff]
  %v244 = vld [vmem:[#allocation3 + $0x8] sm:$0xff]
  %v245 = vpack.c.bf16 %v242, %v241
  %v246 = vld [vmem:[%s5] sm:$0xf]
  %v247 = vld [vmem:[%s5 + $0x4] sm:$0xf]
  %v248 = vld [vmem:[%s5 + $0x8] sm:$0xf]
  %v249 = vld [vmem:[%s5 + $0xc] sm:$0xf]
  %v250 = vld [vmem:[%s5 + $0x10] sm:$0xf]
  %v251 = vld [vmem:[%s5 + $0x14] sm:$0xf]
  %v252 = vld [vmem:[%s5 + $0x18] sm:$0xf]
  %v253 = vld [vmem:[%s5 + $0x1c] sm:$0xf]
  %v254 = vld [vmem:[%s5 + $0x20] sm:$0xf]
  %v255 = vld [vmem:[%s5 + $0x24] sm:$0xf]
  %v256 = vld [vmem:[%s5 + $0x28] sm:$0xf]
  %v257 = vld [vmem:[%s5 + $0x2c] sm:$0xf]
  %v258 = vld [vmem:[%s5 + $0x30] sm:$0xf]
  %v259 = vld [vmem:[%s5 + $0x34] sm:$0xf]
  %v260 = vld [vmem:[%s5 + $0x38] sm:$0xf]
  %v261 = vld [vmem:[%s5 + $0x3c] sm:$0xf]
  %v278 = vunpack.c.l.b16 %v246
  %v279 = vunpack.c.l.b16 %v247
  %v280 = vunpack.c.l.b16 %v248
  %v281 = vunpack.c.l.b16 %v249
  %v282 = vunpack.c.l.b16 %v250
  %v283 = vunpack.c.l.b16 %v251
  %v284 = vunpack.c.l.b16 %v252
  %v285 = vunpack.c.l.b16 %v253
  %v286 = vunpack.c.l.b16 %v254
  %v287 = vunpack.c.l.b16 %v255
  %v288 = vunpack.c.l.b16 %v256
  %v289 = vunpack.c.l.b16 %v257
  %v290 = vunpack.c.l.b16 %v258
  %v291 = vunpack.c.l.b16 %v259
  %v292 = vunpack.c.l.b16 %v260
  %v293 = vunpack.c.l.b16 %v261
  %v294 = vpack.c.b16 %v279, %v278
  %v295 = vpack.c.b16 %v281, %v280
  %v296 = vpack.c.b16 %v283, %v282
  %v297 = vpack.c.b16 %v285, %v284
  %v298 = vpack.c.b16 %v287, %v286
  %v299 = vpack.c.b16 %v289, %v288
  %v300 = vpack.c.b16 %v291, %v290
  %v301 = vpack.c.b16 %v293, %v292
  %310 = vmatpush.bf16.msra.mxu0 %v301
  %311 = vmatpush.bf16.msra.mxu0 %v300
  %312 = vmatpush.bf16.msra.mxu0 %v299
  %313 = vmatpush.bf16.msra.mxu0 %v298
  %314 = vmatpush.bf16.msra.mxu0 %v297
  %315 = vmatpush.bf16.msra.mxu0 %v296
  %316 = vmatpush.bf16.msra.mxu0 %v295
  %317 = vmatpush.bf16.msra.mxu0 %v294
  %318 = vmatmul.bf16.gmra.mxu0 %v245
  %v319 = vpop.f32.mrf.mxu0
  %v320 = vadd.f32 0.0, %v319
  %v321 = vpop.f32.mrf.mxu0
  %v322 = vadd.f32 0.0, %v321
  %323 = vdwg.mxu0
  %v324 = vadd.f32 %v243, %v320
  %v325 = vadd.f32 %v244, %v322
  %326 = vst.msk [vmem:[#allocation3] sm:$0xff] %vm137, %v324
  %327 = vst.msk [vmem:[#allocation3 + $0x8] sm:$0xff] %vm137, %v325
  // Predicated region
  $region34: #{_lambda_.12} parent=0 // pred_check
    %p328 = pneg %p27
  $region35: #{_lambda_.12} parent=0 // pred_check_branch
    %330 = sbr.rel (%p328) target = $region37
  $region36: #{_lambda_.12} parent=0 // pred_region
    %v331 = vld [vmem:[#allocation3] sm:$0xff]
    %v332 = vld [vmem:[#allocation3 + $0x8] sm:$0xff]
    %333 = vst.msk [vmem:[%s7] sm:$0xff] %vm137, %v331
    %334 = vst.msk [vmem:[%s7 + $0x8] sm:$0xff] %vm137, %v332
  $region37: #{_lambda_.12} parent=0 // pred_fallthru
    _
  // Predicated region
  $region38: #{_lambda_.12} parent=0 // pred_check
    _
  $region39: #{_lambda_.12} parent=0 // pred_check_branch
    %336 = sbr.rel (0) target = $region41
  $region40: #{_lambda_.12} parent=0 // pred_region
    _
  $region41: #{_lambda_.12} parent=0 // pred_fallthru
    _
  // Predicated region
  $region42: #{_lambda_.12} parent=0 // pred_check
    _
  $region43: #{_lambda_.12} parent=0 // pred_check_branch
    %338 = sbr.rel (0) target = $region45
  $region44: #{_lambda_.12} parent=0 // pred_region
    _
  $region45: #{_lambda_.12} parent=0 // pred_fallthru
    _

// kernel: _lambda_.17
$region0: #{_lambda_.17}
  #allocation0 [shape = 'u32[]', space=smem, size = 0x4, offset = 0x4, fixed_abs, tag = 'smem constant byte address 0x4 - core index']
  #allocation1 [shape = 'u32[72,128]{1,0:T(1,128)}', space=vmem, size = 0x9000, scoped, tag = 'internal scratch']
  #allocation2 [shape = 'bf16[16,32]{1,0:T(8,128)(2,1)}', space=vmem, size = 0x1000, scoped, tag = 'scratch operand']
  %s0 = inlined_call_operand.vmem [shape: f32[16,32], index: 0, kind: input, shape index: {}]
  %s1 = inlined_call_operand.vmem [shape: f32[1,32], index: 1, kind: input, shape index: {}]
  %s2 = inlined_call_operand.vmem [shape: f32[1,32], index: 2, kind: input, shape index: {}]
  %s3 = inlined_call_operand.vmem [shape: bf16[64,32], index: 3, kind: input, shape index: {}]
  %s4 = inlined_call_operand.hbm [shape: f32[16,64], index: 4, kind: output, shape index: {}]
  %s5 = sld [smem:[#allocation0]]
  $region30: #{_lambda_.17} parent=0
    _
  %s7 = ssub.s32 1, %s5
  %s8 = scalar_select 0, %s7, %s5
  $region1: #{_lambda_.17} parent=0
    #allocation3 [shape = 'u8[8192]{0}', space=vmem, size = 0x2000, scoped, tag = 'output window, operand 0, single buffered']
    #allocation4 [shape = 's32[1]{0}', space=sflag, size = 0x4, scoped, tag = 'scoped memory for _lambda_.17']
    %9 = vsyncpa [#allocation4], 0
    // Predicated region
    $region2: #{_lambda_.17} parent=1 // pred_check
      _
    $region3: #{_lambda_.17} parent=1 // pred_check_branch
      %11 = sbr.rel (0) target = $region5
    $region4: #{_lambda_.17} parent=1 // pred_region
      _
    $region5: #{_lambda_.17} parent=1 // pred_fallthru
      _
    // Predicated region
    $region6: #{_lambda_.17} parent=1 // pred_check
      _
    $region7: #{_lambda_.17} parent=1 // pred_check_branch
      %13 = sbr.rel (0) target = $region9
    $region8: #{_lambda_.17} parent=1 // pred_region
      _
    $region9: #{_lambda_.17} parent=1 // pred_fallthru
      _
    // Predicated region
    $region10: #{_lambda_.17} parent=1 // pred_check
      _
    $region11: #{_lambda_.17} parent=1 // pred_check_branch
      %15 = sbr.rel (0) target = $region13
    $region12: #{_lambda_.17} parent=1 // pred_region
      _
    $region13: #{_lambda_.17} parent=1 // pred_fallthru
      _
    // Predicated region
    $region14: #{_lambda_.17} parent=1 // pred_check
      _
    $region15: #{_lambda_.17} parent=1 // pred_check_branch
      %17 = sbr.rel (0) target = $region17
    $region16: #{_lambda_.17} parent=1 // pred_region
      _
    $region17: #{_lambda_.17} parent=1 // pred_fallthru
      _
    %p19 = scmp.eq.s32.totalorder 0, 0
    // Predicated region
    $region18: #{_lambda_.17} parent=1 // pred_check
      %p20 = pneg %p19
    $region19: #{_lambda_.17} parent=1 // pred_check_branch
      %22 = sbr.rel (%p20) target = $region21
    $region20: #{_lambda_.17} parent=1 // pred_region
      %v23 = vld [vmem:[%s0] sm:$0xff]
      %v24 = vld [vmem:[%s0 + $0x8] sm:$0xff]
      %v25 = vld [vmem:[%s1] sm:$0x1]
      %v26 = vld [vmem:[%s2] sm:$0x1]
      %vm27 = vcmask 261120
      %v28 = vsel %vm27, %v23, 0.0
      %29 = vadd.xlane.f32.xlu0 %v28
      %v30 = vpop.xlane.xlu0 %29
      %v31 = vsel %vm27, %v24, 0.0
      %32 = vadd.xlane.f32.xlu0 %v31
      %v33 = vpop.xlane.xlu0 %32
      %v34 = vrcp.pop 32.0
      %v35 = vmul.f32 32.0, %v34
      %v36 = vsub.f32 1.0, %v35
      %v37 = vmul.f32 %v34, %v36
      %v38 = vadd.f32 %v34, %v37
      %vm39 = vweird.f32 %v34
      %v40 = vsel %vm39, %v34, %v38
      %v41 = vmul.f32 %v30, %v40
      %v42 = vmul.f32 %v33, %v40
      %v43 = vsub.f32 %v23, %v41
      %v44 = vsub.f32 %v24, %v42
      %v45 = vmul.f32 %v43, %v43
      %v46 = vmul.f32 %v44, %v44
      %v47 = vsel %vm27, %v45, 0.0
      %48 = vadd.xlane.f32.xlu0 %v47
      %v49 = vpop.xlane.xlu0 %48
      %v50 = vsel %vm27, %v46, 0.0
      %51 = vadd.xlane.f32.xlu0 %v50
      %v52 = vpop.xlane.xlu0 %51
      %v53 = vmul.f32 %v49, %v40
      %v54 = vmul.f32 %v52, %v40
      %v55 = vadd.f32 %v53, 1e-05
      %v56 = vadd.f32 %v54, 1e-05
      %v57 = vrsqrt.pop %v55
      %v58 = vmul.f32 %v57, %v55
      %v59 = vmul.f32 %v58, %v57
      %v60 = vmul.f32 0.5, %v59
      %v61 = vsub.f32 1.5, %v60
      %v62 = vmul.f32 %v57, %v61
      %vm63 = vweird.f32 %v55
      %vm64 = vweird.f32 %v57
      %vm65 = vmor %vm63, %vm64
      %v66 = vsel %vm65, %v57, %v62
      %v67 = vrsqrt.pop %v56
      %v68 = vmul.f32 %v67, %v56
      %v69 = vmul.f32 %v68, %v67
      %v70 = vmul.f32 0.5, %v69
      %v71 = vsub.f32 1.5, %v70
      %v72 = vmul.f32 %v67, %v71
      %vm73 = vweird.f32 %v56
      %vm74 = vweird.f32 %v67
      %vm75 = vmor %vm73, %vm74
      %v76 = vsel %vm75, %v67, %v72
      %v77 = vmul.f32 %v43, %v66
      %v78 = vmul.f32 %v44, %v76
      %v80 = vperm.slane %v25, 0
      %v82 = vmul.f32 %v77, %v80
      %v83 = vmul.f32 %v78, %v80
      %v85 = vperm.slane %v26, 0
      %v87 = vadd.f32 %v82, %v85
      %v88 = vadd.f32 %v83, %v85
      %v89 = vpack.c.bf16 %v87, %v87
      %v90 = vpack.c.bf16 %v88, %v88
      %vm91 = vcmask 257024
      %92 = vst.msk [vmem:[#allocation2] sm:$0xf] %vm91, %v89
      %93 = vst.msk [vmem:[#allocation2 + $0x4] sm:$0xf] %vm91, %v90
    $region21: #{_lambda_.17} parent=1 // pred_fallthru
      _
    %v94 = vld [vmem:[#allocation2] sm:$0xf]
    %v95 = vld [vmem:[#allocation2 + $0x4] sm:$0xf]
    %v96 = vld [vmem:[%s3] sm:$0xf]
    %v97 = vld [vmem:[%s3 + $0x4] sm:$0xf]
    %v98 = vld [vmem:[%s3 + $0x8] sm:$0xf]
    %v99 = vld [vmem:[%s3 + $0xc] sm:$0xf]
    %v100 = vld [vmem:[%s3 + $0x10] sm:$0xf]
    %v101 = vld [vmem:[%s3 + $0x14] sm:$0xf]
    %v102 = vld [vmem:[%s3 + $0x18] sm:$0xf]
    %v103 = vld [vmem:[%s3 + $0x1c] sm:$0xf]
    %v106 = vunpack.c.l.b16 %v94
    %v107 = vunpack.c.l.b16 %v95
    %v108 = vpack.c.b16 %v107, %v106
    %v117 = vunpack.c.l.b16 %v96
    %v118 = vunpack.c.l.b16 %v97
    %v119 = vunpack.c.l.b16 %v98
    %v120 = vunpack.c.l.b16 %v99
    %v121 = vunpack.c.l.b16 %v100
    %v122 = vunpack.c.l.b16 %v101
    %v123 = vunpack.c.l.b16 %v102
    %v124 = vunpack.c.l.b16 %v103
    %v125 = vpack.c.b16 %v118, %v117
    %v126 = vpack.c.b16 %v120, %v119
    %v127 = vpack.c.b16 %v122, %v121
    %v128 = vpack.c.b16 %v124, %v123
    %vm129 = vcmask 261120
    %v131 = vsel %vm129, %v108, 0
    %v134 = vsel %vm129, %v125, 0
    %v137 = vsel %vm129, %v126, 0
    %v140 = vsel %vm129, %v127, 0
    %v143 = vsel %vm129, %v128, 0
    %145 = vmatpush.bf16.xpose.msra.mxu0 0
    %146 = vmatpush.bf16.xpose.msra.mxu0 0
    %147 = vmatpush.bf16.xpose.msra.mxu0 0
    %148 = vmatpush.bf16.xpose.msra.mxu0 0
    %149 = vmatpush.bf16.xpose.msra.mxu0 %v143
    %150 = vmatpush.bf16.xpose.msra.mxu0 %v140
    %151 = vmatpush.bf16.xpose.msra.mxu0 %v137
    %152 = vmatpush.bf16.xpose.msra.mxu0 %v134
    %153 = vmatmul.bf16.gmra.mxu0 %v131
    %v154 = vpop.f32.mrf.mxu0
    %v155 = vadd.f32 0.0, %v154
    %v156 = vpop.f32.mrf.mxu0
    %v157 = vadd.f32 0.0, %v156
    %158 = vdwg.mxu0
    %vm159 = vcmask 523264
    %160 = vst.msk [vmem:[#allocation3] sm:$0xff] %vm159, %v155
    %161 = vst.msk [vmem:[#allocation3 + $0x8] sm:$0xff] %vm159, %v157
    // Predicated region
    $region22: #{_lambda_.17} parent=1 // pred_check
      _
    $region23: #{_lambda_.17} parent=1 // pred_check_branch
      %163 = sbr.rel (0) target = $region25
    $region24: #{_lambda_.17} parent=1 // pred_region
      %165 = vsyncadd [#allocation4], 0
      %s166 = sshll.u32 [#allocation3], 4
      %s167 = int_to_ptr.vmem [resolvable:$true] %s166
      %s168 = sshll.u32 %s4, 4
      %s169 = int_to_ptr.hbm [resolvable:$true] %s168
      %174 = dma.vmem_to_hbm [thread:$0]  %s167, 256, %s169, [#allocation4], 128, 128, 8
    $region25: #{_lambda_.17} parent=1 // pred_fallthru
      _
    // Predicated region
    $region26: #{_lambda_.17} parent=1 // pred_check
      _
    $region27: #{_lambda_.17} parent=1 // pred_check_branch
      %176 = sbr.rel (0) target = $region29
    $region28: #{_lambda_.17} parent=1 // pred_region
      %178 = dma.done [#allocation4], 256
    $region29: #{_lambda_.17} parent=1 // pred_fallthru
      _
    %179 = vsyncpa [#allocation4], 1

</llo_original>
